<compile_context>
chip_gen: v5e
topology: v5e:2x2
jax: 0.10.0
libtpu: 0.0.40
codegen_flags: <defaults>
</compile_context>

<pallas_src>
import functools

import jax
import jax.numpy as jnp
from jax.experimental import pallas as pl
from jax.experimental.pallas import tpu as pltpu


def _ipd_kernel_resident(a_ref, b_ref, o_ref, *, tn):
    # a_ref: (tm, D) row block i of inp; b_ref: (N, D) full inp, resident in VMEM.
    j = pl.program_id(1)
    a = a_ref[...]
    b = b_ref[pl.ds(pl.multiple_of(j * tn, tn), tn), :]
    s = jax.lax.dot_general(
        a, b,
        dimension_numbers=(((1,), (1,)), ((), ())),   # inp @ inp.T
        preferred_element_type=jnp.float32,
    )
    o_ref[...] = jax.nn.sigmoid(s).astype(o_ref.dtype)


def _ipd_kernel_streaming(a_ref, b_ref, o_ref):
    # a_ref: (tm, D) row block i; b_ref: (tn, D) row block j (acts as columns of inp.T).
    s = jax.lax.dot_general(
        a_ref[...], b_ref[...],
        dimension_numbers=(((1,), (1,)), ((), ())),
        preferred_element_type=jnp.float32,
    )
    o_ref[...] = jax.nn.sigmoid(s).astype(o_ref.dtype)


def _pick_tile(n):
    # Largest lane-friendly tile that divides N; fall back to full N
    # (block == full array dim is always legal).
    for cand in (1024, 512, 256, 128):
        if n % cand == 0:
            return cand
    return n


def inner_product_decoder(inp, *, tile=None, out_dtype=None,
                          resident_limit_bytes=16 * 1024 * 1024):
    """sigmoid(inp @ inp.T). inp: (N, D) float array. Returns (N, N)."""
    N, D = inp.shape
    out_dtype = out_dtype if out_dtype is not None else inp.dtype
    tm = tn = tile if tile is not None else _pick_tile(N)
    assert N % tm == 0 and N % tn == 0, "N must be divisible by tile size"

    in_itemsize = jnp.dtype(inp.dtype).itemsize
    out_itemsize = jnp.dtype(out_dtype).itemsize

    # Keep the whole second operand resident in VMEM when it comfortably fits.
    resident = (N * D * in_itemsize) <= resident_limit_bytes

    grid = (N // tm, N // tn)
    if resident:
        kernel = functools.partial(_ipd_kernel_resident, tn=tn)
        b_spec = pl.BlockSpec((N, D), lambda i, j: (0, 0))   # constant block -> DMA'd once
        b_bytes = 2 * N * D * in_itemsize                    # conservative (double-buffer)
    else:
        kernel = _ipd_kernel_streaming
        b_spec = pl.BlockSpec((tn, D), lambda i, j: (j, 0))
        b_bytes = 2 * tn * D * in_itemsize

    # Estimated VMEM footprint (double-buffered A block + B + output block).
    est_vmem = 2 * tm * D * in_itemsize + b_bytes + 2 * tm * tn * out_itemsize
    cp_kwargs = dict(dimension_semantics=("parallel", "parallel"))
    if est_vmem > 24 * 1024 * 1024:
        # Raise the scoped VMEM limit but stay well under v7x's 64 MiB physical VMEM.
        cp_kwargs["vmem_limit_bytes"] = min(est_vmem + (4 << 20), 56 * 1024 * 1024)

    return pl.pallas_call(
        kernel,
        out_shape=jax.ShapeDtypeStruct((N, N), out_dtype),
        grid=grid,
        in_specs=[
            pl.BlockSpec((tm, D), lambda i, j: (i, 0)),  # row block of inp
            b_spec,                                      # inp rows used as inp.T columns
        ],
        out_specs=pl.BlockSpec((tm, tn), lambda i, j: (i, j)),
        compiler_params=pltpu.CompilerParams(**cp_kwargs),
    )(inp, inp)


def inner_product_decoder_ref(inp):
    return jax.nn.sigmoid(inp @ inp.T)


if __name__ == "__main__":
    # InnerProductDecoder has no learned parameters (dropout=0.0, act=sigmoid).
    key = jax.random.PRNGKey(0)

    # Test shape from the module's usage: (num_nodes, latent_dim).
    N, D = 256, 128
    inp = jax.random.normal(key, (N, D), dtype=jnp.float32)

    out = inner_product_decoder(inp)
    out = jax.block_until_ready(out)
    ref = inner_product_decoder_ref(inp)
    assert out.shape == (N, N)
    assert jnp.allclose(out, ref, atol=1e-5, rtol=1e-5), "mismatch vs reference (single-step)"

    # Second shape exercises the tiled / resident-B path with a real 2x2 grid.
    key2 = jax.random.PRNGKey(1)
    N2, D2 = 1024, 64
    inp2 = jax.random.normal(key2, (N2, D2), dtype=jnp.float32)
    out2 = jax.block_until_ready(inner_product_decoder(inp2))
    ref2 = inner_product_decoder_ref(inp2)
    assert out2.shape == (N2, N2)
    assert jnp.allclose(out2, ref2, atol=1e-5, rtol=1e-5), "mismatch vs reference (tiled)"

    print("KERNEL_OK")
</pallas_src>

<mosaic_0001>
module attributes {stable_mosaic.version = 11 : i64} {
  func.func @_ipd_kernel_resident(%arg0: i32, %arg1: i32, %arg2: memref<256x128xf32, #tpu.memory_space<vmem>>, %arg3: memref<256x128xf32, #tpu.memory_space<vmem>>, %arg4: memref<256x256xf32, #tpu.memory_space<vmem>>) attributes {dimension_semantics = [#tpu.dimension_semantics<parallel>, #tpu.dimension_semantics<parallel>], iteration_bounds = array<i64: 1, 1>, scalar_prefetch = 0 : i64, scratch_operands = 0 : i64, tpu.core_type = #tpu.core_type<tc>, window_params = [{transform_indices = @transform_0, window_bounds = array<i64: 256, 128>}, {pipeline_mode = #tpu.pipeline_mode<synchronous>, transform_indices = @transform_1, window_bounds = array<i64: 256, 128>}, {transform_indices = @transform_2, window_bounds = array<i64: 256, 256>}]} {
    %c0 = arith.constant 0 : index
    %c0_0 = arith.constant 0 : index
    %0 = vector.load %arg2[%c0, %c0_0] : memref<256x128xf32, #tpu.memory_space<vmem>>, vector<256x128xf32>
    %c256_i32 = arith.constant 256 : i32
    %1 = arith.muli %arg1, %c256_i32 : i32
    %2 = tpu.assume_multiple %1, 256 : i32
    %3 = arith.index_cast %2 : i32 to index
    %c0_1 = arith.constant 0 : index
    %4 = vector.load %arg3[%3, %c0_1] : memref<256x128xf32, #tpu.memory_space<vmem>>, vector<256x128xf32>
    %cst = arith.constant dense<0.000000e+00> : vector<256x256xf32>
    %5 = tpu.matmul %0, %4, %cst {dimension_numbers = #tpu.dot_dimension_numbers<[1], [1], [0], [0], [0, 0, 1, 0], [], []>} : vector<256x128xf32>, vector<256x128xf32>, vector<256x256xf32> -> vector<256x256xf32>
    %6 = arith.negf %5 : vector<256x256xf32>
    %7 = math.exp %6 : vector<256x256xf32>
    %cst_2 = arith.constant 1.000000e+00 : f32
    %8 = vector.broadcast %cst_2 : f32 to vector<256x256xf32>
    %9 = arith.addf %8, %7 : vector<256x256xf32>
    %10 = arith.divf %8, %9 : vector<256x256xf32>
    %c0_3 = arith.constant 0 : index
    %c0_4 = arith.constant 0 : index
    %11 = vector.load %arg4[%c0_3, %c0_4] : memref<256x256xf32, #tpu.memory_space<vmem>>, vector<256x256xf32>
    tpu.vector_store %arg4[%c0_3, %c0_4], %10 {strides = array<i32>} : memref<256x256xf32, #tpu.memory_space<vmem>>, vector<256x256xf32>,
    return
  }
  func.func @transform_0(%arg0: i32, %arg1: i32) -> (i32, i32) {
    %c0_i32 = arith.constant 0 : i32
    %c0_i32_0 = arith.constant 0 : i32
    return %arg0, %c0_i32 : i32, i32
  }
  func.func @transform_1(%arg0: i32, %arg1: i32) -> (i32, i32) {
    %c0_i32 = arith.constant 0 : i32
    %c0_i32_0 = arith.constant 0 : i32
    %c0_i32_1 = arith.constant 0 : i32
    return %c0_i32, %c0_i32_0 : i32, i32
  }
  func.func @transform_2(%arg0: i32, %arg1: i32) -> (i32, i32) {
    %c0_i32 = arith.constant 0 : i32
    return %arg0, %arg1 : i32, i32
  }
}

</mosaic_0001>

<llo_original>
// kernel: tpu_custom_call.1
$region0: #{tpu_custom_call.1}
  #allocation0 [shape = 'u32[]', space=smem, size = 0x4, offset = 0x4, fixed_abs, tag = 'smem constant byte address 0x4 - core index']
  #allocation1 [shape = 'u32[72,128]{1,0:T(1,128)}', space=vmem, size = 0x9000, scoped, tag = 'internal scratch']
  %s0 = inlined_call_operand.hbm [shape: f32[256,128], index: 0, kind: input, shape index: {}]
  %s1 = inlined_call_operand.hbm [shape: f32[256,128], index: 1, kind: input, shape index: {}]
  %s2 = inlined_call_operand.hbm [shape: f32[256,256], index: 2, kind: output, shape index: {}]
  %s3 = sld [smem:[#allocation0]]
  $region26: #{tpu_custom_call.1} parent=0
    _
  %s5 = ssub.s32 1, %s3
  %s6 = scalar_select 0, %s5, %s3
  $region1: #{tpu_custom_call.1} parent=0
    #allocation2 [shape = 'u8[131072]{0}', space=vmem, size = 0x20000, scoped, tag = 'input window, operand 0, single buffered']
    #allocation3 [shape = 's32[1]{0}', space=sflag, size = 0x4, scoped, tag = 'scoped memory for tpu_custom_call.1']
    #allocation4 [shape = 's32[1]{0}', space=sflag, size = 0x4, scoped, tag = 'scoped memory for tpu_custom_call.1']
    #allocation5 [shape = 'u8[131072]{0}', space=vmem, size = 0x20000, scoped, tag = 'input window, operand 1, single buffered']
    #allocation6 [shape = 's32[1]{0}', space=sflag, size = 0x4, scoped, tag = 'scoped memory for tpu_custom_call.1']
    #allocation7 [shape = 'u8[262144]{0}', space=vmem, size = 0x40000, scoped, tag = 'output window, operand 0, single buffered']
    %7 = vsyncpa [#allocation3], 0
    %8 = vsyncpa [#allocation6], 0
    %9 = vsyncpa [#allocation4], 0
    // Predicated region
    $region2: #{tpu_custom_call.1} parent=1 // pred_check
      _
    $region3: #{tpu_custom_call.1} parent=1 // pred_check_branch
      %11 = sbr.rel (0) target = $region5
    $region4: #{tpu_custom_call.1} parent=1 // pred_region
      %13 = vsyncadd [#allocation3], 0
      %s14 = sshll.u32 %s0, 4
      %s15 = int_to_ptr.hbm [resolvable:$true] %s14
      %s16 = sshll.u32 [#allocation2], 4
      %s17 = int_to_ptr.vmem [resolvable:$true] %s16
      %22 = dma.hbm_to_vmem [thread:$0]  %s15, 4096, %s17, [#allocation3], 128, 128, 8
    $region5: #{tpu_custom_call.1} parent=1 // pred_fallthru
      _
    // Predicated region
    $region6: #{tpu_custom_call.1} parent=1 // pred_check
      _
    $region7: #{tpu_custom_call.1} parent=1 // pred_check_branch
      %24 = sbr.rel (0) target = $region9
    $region8: #{tpu_custom_call.1} parent=1 // pred_region
      %26 = vsyncadd [#allocation6], 0
      %s27 = sshll.u32 %s1, 4
      %s28 = int_to_ptr.hbm [resolvable:$true] %s27
      %s29 = sshll.u32 [#allocation5], 4
      %s30 = int_to_ptr.vmem [resolvable:$true] %s29
      %35 = dma.hbm_to_vmem [thread:$0]  %s28, 4096, %s30, [#allocation6], 128, 128, 8
    $region9: #{tpu_custom_call.1} parent=1 // pred_fallthru
      _
    // Predicated region
    $region10: #{tpu_custom_call.1} parent=1 // pred_check
      _
    $region11: #{tpu_custom_call.1} parent=1 // pred_check_branch
      %37 = sbr.rel (0) target = $region13
    $region12: #{tpu_custom_call.1} parent=1 // pred_region
      %39 = dma.done [#allocation3], 4096
    $region13: #{tpu_custom_call.1} parent=1 // pred_fallthru
      _
    // Predicated region
    $region14: #{tpu_custom_call.1} parent=1 // pred_check
      _
    $region15: #{tpu_custom_call.1} parent=1 // pred_check_branch
      %41 = sbr.rel (0) target = $region17
    $region16: #{tpu_custom_call.1} parent=1 // pred_region
      %43 = dma.done [#allocation6], 4096
    $region17: #{tpu_custom_call.1} parent=1 // pred_fallthru
      _
    %v44 = vld [vmem:[#allocation2] sm:$0xff]
    %v45 = vld [vmem:[#allocation2 + $0x8] sm:$0xff]
    %v46 = vld [vmem:[#allocation2 + $0x10] sm:$0xff]
    %v47 = vld [vmem:[#allocation2 + $0x18] sm:$0xff]
    %v48 = vld [vmem:[#allocation2 + $0x20] sm:$0xff]
    %v49 = vld [vmem:[#allocation2 + $0x28] sm:$0xff]
    %v50 = vld [vmem:[#allocation2 + $0x30] sm:$0xff]
    %v51 = vld [vmem:[#allocation2 + $0x38] sm:$0xff]
    %v52 = vld [vmem:[#allocation2 + $0x40] sm:$0xff]
    %v53 = vld [vmem:[#allocation2 + $0x48] sm:$0xff]
    %v54 = vld [vmem:[#allocation2 + $0x50] sm:$0xff]
    %v55 = vld [vmem:[#allocation2 + $0x58] sm:$0xff]
    %v56 = vld [vmem:[#allocation2 + $0x60] sm:$0xff]
    %v57 = vld [vmem:[#allocation2 + $0x68] sm:$0xff]
    %v58 = vld [vmem:[#allocation2 + $0x70] sm:$0xff]
    %v59 = vld [vmem:[#allocation2 + $0x78] sm:$0xff]
    %v60 = vld [vmem:[#allocation2 + $0x80] sm:$0xff]
    %v61 = vld [vmem:[#allocation2 + $0x88] sm:$0xff]
    %v62 = vld [vmem:[#allocation2 + $0x90] sm:$0xff]
    %v63 = vld [vmem:[#allocation2 + $0x98] sm:$0xff]
    %v64 = vld [vmem:[#allocation2 + $0xa0] sm:$0xff]
    %v65 = vld [vmem:[#allocation2 + $0xa8] sm:$0xff]
    %v66 = vld [vmem:[#allocation2 + $0xb0] sm:$0xff]
    %v67 = vld [vmem:[#allocation2 + $0xb8] sm:$0xff]
    %v68 = vld [vmem:[#allocation2 + $0xc0] sm:$0xff]
    %v69 = vld [vmem:[#allocation2 + $0xc8] sm:$0xff]
    %v70 = vld [vmem:[#allocation2 + $0xd0] sm:$0xff]
    %v71 = vld [vmem:[#allocation2 + $0xd8] sm:$0xff]
    %v72 = vld [vmem:[#allocation2 + $0xe0] sm:$0xff]
    %v73 = vld [vmem:[#allocation2 + $0xe8] sm:$0xff]
    %v74 = vld [vmem:[#allocation2 + $0xf0] sm:$0xff]
    %v75 = vld [vmem:[#allocation2 + $0xf8] sm:$0xff]
    %s76 = smul.u32 0, 256
    %s77 = scalar_lea.vmem [#allocation5], %s76
    %v78 = vld [vmem:[%s77] sm:$0xff]
    %v79 = vld [vmem:[%s77 + $0x8] sm:$0xff]
    %v80 = vld [vmem:[%s77 + $0x10] sm:$0xff]
    %v81 = vld [vmem:[%s77 + $0x18] sm:$0xff]
    %v82 = vld [vmem:[%s77 + $0x20] sm:$0xff]
    %v83 = vld [vmem:[%s77 + $0x28] sm:$0xff]
    %v84 = vld [vmem:[%s77 + $0x30] sm:$0xff]
    %v85 = vld [vmem:[%s77 + $0x38] sm:$0xff]
    %v86 = vld [vmem:[%s77 + $0x40] sm:$0xff]
    %v87 = vld [vmem:[%s77 + $0x48] sm:$0xff]
    %v88 = vld [vmem:[%s77 + $0x50] sm:$0xff]
    %v89 = vld [vmem:[%s77 + $0x58] sm:$0xff]
    %v90 = vld [vmem:[%s77 + $0x60] sm:$0xff]
    %v91 = vld [vmem:[%s77 + $0x68] sm:$0xff]
    %v92 = vld [vmem:[%s77 + $0x70] sm:$0xff]
    %v93 = vld [vmem:[%s77 + $0x78] sm:$0xff]
    %v94 = vld [vmem:[%s77 + $0x80] sm:$0xff]
    %v95 = vld [vmem:[%s77 + $0x88] sm:$0xff]
    %v96 = vld [vmem:[%s77 + $0x90] sm:$0xff]
    %v97 = vld [vmem:[%s77 + $0x98] sm:$0xff]
    %v98 = vld [vmem:[%s77 + $0xa0] sm:$0xff]
    %v99 = vld [vmem:[%s77 + $0xa8] sm:$0xff]
    %v100 = vld [vmem:[%s77 + $0xb0] sm:$0xff]
    %v101 = vld [vmem:[%s77 + $0xb8] sm:$0xff]
    %v102 = vld [vmem:[%s77 + $0xc0] sm:$0xff]
    %v103 = vld [vmem:[%s77 + $0xc8] sm:$0xff]
    %v104 = vld [vmem:[%s77 + $0xd0] sm:$0xff]
    %v105 = vld [vmem:[%s77 + $0xd8] sm:$0xff]
    %v106 = vld [vmem:[%s77 + $0xe0] sm:$0xff]
    %v107 = vld [vmem:[%s77 + $0xe8] sm:$0xff]
    %v108 = vld [vmem:[%s77 + $0xf0] sm:$0xff]
    %v109 = vld [vmem:[%s77 + $0xf8] sm:$0xff]
    %110 = vmatpush.xpose.msra.mxu0 %v93
    %111 = vmatpush.xpose.msra.mxu0 %v92
    %112 = vmatpush.xpose.msra.mxu0 %v91
    %113 = vmatpush.xpose.msra.mxu0 %v90
    %114 = vmatpush.xpose.msra.mxu0 %v89
    %115 = vmatpush.xpose.msra.mxu0 %v88
    %116 = vmatpush.xpose.msra.mxu0 %v87
    %117 = vmatpush.xpose.msra.mxu0 %v86
    %118 = vmatpush.xpose.msra.mxu0 %v85
    %119 = vmatpush.xpose.msra.mxu0 %v84
    %120 = vmatpush.xpose.msra.mxu0 %v83
    %121 = vmatpush.xpose.msra.mxu0 %v82
    %122 = vmatpush.xpose.msra.mxu0 %v81
    %123 = vmatpush.xpose.msra.mxu0 %v80
    %124 = vmatpush.xpose.msra.mxu0 %v79
    %125 = vmatpush.xpose.msra.mxu0 %v78
    %126 = vmatmul.f32.gmra.mxu0 %v44
    %v127 = vpop.f32.mrf.mxu0
    %v128 = vadd.f32 0.0, %v127
    %129 = vmatmul.f32.gmra.mxu0 %v45
    %v130 = vpop.f32.mrf.mxu0
    %v131 = vadd.f32 0.0, %v130
    %132 = vmatmul.f32.gmra.mxu0 %v46
    %v133 = vpop.f32.mrf.mxu0
    %v134 = vadd.f32 0.0, %v133
    %135 = vmatmul.f32.gmra.mxu0 %v47
    %v136 = vpop.f32.mrf.mxu0
    %v137 = vadd.f32 0.0, %v136
    %138 = vmatmul.f32.gmra.mxu0 %v48
    %v139 = vpop.f32.mrf.mxu0
    %v140 = vadd.f32 0.0, %v139
    %141 = vmatmul.f32.gmra.mxu0 %v49
    %v142 = vpop.f32.mrf.mxu0
    %v143 = vadd.f32 0.0, %v142
    %144 = vmatmul.f32.gmra.mxu0 %v50
    %v145 = vpop.f32.mrf.mxu0
    %v146 = vadd.f32 0.0, %v145
    %147 = vmatmul.f32.gmra.mxu0 %v51
    %v148 = vpop.f32.mrf.mxu0
    %v149 = vadd.f32 0.0, %v148
    %150 = vmatmul.f32.gmra.mxu0 %v52
    %v151 = vpop.f32.mrf.mxu0
    %v152 = vadd.f32 0.0, %v151
    %153 = vmatmul.f32.gmra.mxu0 %v53
    %v154 = vpop.f32.mrf.mxu0
    %v155 = vadd.f32 0.0, %v154
    %156 = vmatmul.f32.gmra.mxu0 %v54
    %v157 = vpop.f32.mrf.mxu0
    %v158 = vadd.f32 0.0, %v157
    %159 = vmatmul.f32.gmra.mxu0 %v55
    %v160 = vpop.f32.mrf.mxu0
    %v161 = vadd.f32 0.0, %v160
    %162 = vmatmul.f32.gmra.mxu0 %v56
    %v163 = vpop.f32.mrf.mxu0
    %v164 = vadd.f32 0.0, %v163
    %165 = vmatmul.f32.gmra.mxu0 %v57
    %v166 = vpop.f32.mrf.mxu0
    %v167 = vadd.f32 0.0, %v166
    %168 = vmatmul.f32.gmra.mxu0 %v58
    %v169 = vpop.f32.mrf.mxu0
    %v170 = vadd.f32 0.0, %v169
    %171 = vmatmul.f32.gmra.mxu0 %v59
    %v172 = vpop.f32.mrf.mxu0
    %v173 = vadd.f32 0.0, %v172
    %174 = vmatmul.f32.gmra.mxu0 %v60
    %v175 = vpop.f32.mrf.mxu0
    %v176 = vadd.f32 0.0, %v175
    %177 = vmatmul.f32.gmra.mxu0 %v61
    %v178 = vpop.f32.mrf.mxu0
    %v179 = vadd.f32 0.0, %v178
    %180 = vmatmul.f32.gmra.mxu0 %v62
    %v181 = vpop.f32.mrf.mxu0
    %v182 = vadd.f32 0.0, %v181
    %183 = vmatmul.f32.gmra.mxu0 %v63
    %v184 = vpop.f32.mrf.mxu0
    %v185 = vadd.f32 0.0, %v184
    %186 = vmatmul.f32.gmra.mxu0 %v64
    %v187 = vpop.f32.mrf.mxu0
    %v188 = vadd.f32 0.0, %v187
    %189 = vmatmul.f32.gmra.mxu0 %v65
    %v190 = vpop.f32.mrf.mxu0
    %v191 = vadd.f32 0.0, %v190
    %192 = vmatmul.f32.gmra.mxu0 %v66
    %v193 = vpop.f32.mrf.mxu0
    %v194 = vadd.f32 0.0, %v193
    %195 = vmatmul.f32.gmra.mxu0 %v67
    %v196 = vpop.f32.mrf.mxu0
    %v197 = vadd.f32 0.0, %v196
    %198 = vmatmul.f32.gmra.mxu0 %v68
    %v199 = vpop.f32.mrf.mxu0
    %v200 = vadd.f32 0.0, %v199
    %201 = vmatmul.f32.gmra.mxu0 %v69
    %v202 = vpop.f32.mrf.mxu0
    %v203 = vadd.f32 0.0, %v202
    %204 = vmatmul.f32.gmra.mxu0 %v70
    %v205 = vpop.f32.mrf.mxu0
    %v206 = vadd.f32 0.0, %v205
    %207 = vmatmul.f32.gmra.mxu0 %v71
    %v208 = vpop.f32.mrf.mxu0
    %v209 = vadd.f32 0.0, %v208
    %210 = vmatmul.f32.gmra.mxu0 %v72
    %v211 = vpop.f32.mrf.mxu0
    %v212 = vadd.f32 0.0, %v211
    %213 = vmatmul.f32.gmra.mxu0 %v73
    %v214 = vpop.f32.mrf.mxu0
    %v215 = vadd.f32 0.0, %v214
    %216 = vmatmul.f32.gmra.mxu0 %v74
    %v217 = vpop.f32.mrf.mxu0
    %v218 = vadd.f32 0.0, %v217
    %219 = vmatmul.f32.gmra.mxu0 %v75
    %v220 = vpop.f32.mrf.mxu0
    %v221 = vadd.f32 0.0, %v220
    %222 = vdwg.mxu0
    %223 = vmatpush.xpose.msra.mxu0 %v109
    %224 = vmatpush.xpose.msra.mxu0 %v108
    %225 = vmatpush.xpose.msra.mxu0 %v107
    %226 = vmatpush.xpose.msra.mxu0 %v106
    %227 = vmatpush.xpose.msra.mxu0 %v105
    %228 = vmatpush.xpose.msra.mxu0 %v104
    %229 = vmatpush.xpose.msra.mxu0 %v103
    %230 = vmatpush.xpose.msra.mxu0 %v102
    %231 = vmatpush.xpose.msra.mxu0 %v101
    %232 = vmatpush.xpose.msra.mxu0 %v100
    %233 = vmatpush.xpose.msra.mxu0 %v99
    %234 = vmatpush.xpose.msra.mxu0 %v98
    %235 = vmatpush.xpose.msra.mxu0 %v97
    %236 = vmatpush.xpose.msra.mxu0 %v96
    %237 = vmatpush.xpose.msra.mxu0 %v95
    %238 = vmatpush.xpose.msra.mxu0 %v94
    %239 = vmatmul.f32.gmra.mxu0 %v44
    %v240 = vpop.f32.mrf.mxu0
    %v241 = vadd.f32 0.0, %v240
    %242 = vmatmul.f32.gmra.mxu0 %v45
    %v243 = vpop.f32.mrf.mxu0
    %v244 = vadd.f32 0.0, %v243
    %245 = vmatmul.f32.gmra.mxu0 %v46
    %v246 = vpop.f32.mrf.mxu0
    %v247 = vadd.f32 0.0, %v246
    %248 = vmatmul.f32.gmra.mxu0 %v47
    %v249 = vpop.f32.mrf.mxu0
    %v250 = vadd.f32 0.0, %v249
    %251 = vmatmul.f32.gmra.mxu0 %v48
    %v252 = vpop.f32.mrf.mxu0
    %v253 = vadd.f32 0.0, %v252
    %254 = vmatmul.f32.gmra.mxu0 %v49
    %v255 = vpop.f32.mrf.mxu0
    %v256 = vadd.f32 0.0, %v255
    %257 = vmatmul.f32.gmra.mxu0 %v50
    %v258 = vpop.f32.mrf.mxu0
    %v259 = vadd.f32 0.0, %v258
    %260 = vmatmul.f32.gmra.mxu0 %v51
    %v261 = vpop.f32.mrf.mxu0
    %v262 = vadd.f32 0.0, %v261
    %263 = vmatmul.f32.gmra.mxu0 %v52
    %v264 = vpop.f32.mrf.mxu0
    %v265 = vadd.f32 0.0, %v264
    %266 = vmatmul.f32.gmra.mxu0 %v53
    %v267 = vpop.f32.mrf.mxu0
    %v268 = vadd.f32 0.0, %v267
    %269 = vmatmul.f32.gmra.mxu0 %v54
    %v270 = vpop.f32.mrf.mxu0
    %v271 = vadd.f32 0.0, %v270
    %272 = vmatmul.f32.gmra.mxu0 %v55
    %v273 = vpop.f32.mrf.mxu0
    %v274 = vadd.f32 0.0, %v273
    %275 = vmatmul.f32.gmra.mxu0 %v56
    %v276 = vpop.f32.mrf.mxu0
    %v277 = vadd.f32 0.0, %v276
    %278 = vmatmul.f32.gmra.mxu0 %v57
    %v279 = vpop.f32.mrf.mxu0
    %v280 = vadd.f32 0.0, %v279
    %281 = vmatmul.f32.gmra.mxu0 %v58
    %v282 = vpop.f32.mrf.mxu0
    %v283 = vadd.f32 0.0, %v282
    %284 = vmatmul.f32.gmra.mxu0 %v59
    %v285 = vpop.f32.mrf.mxu0
    %v286 = vadd.f32 0.0, %v285
    %287 = vmatmul.f32.gmra.mxu0 %v60
    %v288 = vpop.f32.mrf.mxu0
    %v289 = vadd.f32 0.0, %v288
    %290 = vmatmul.f32.gmra.mxu0 %v61
    %v291 = vpop.f32.mrf.mxu0
    %v292 = vadd.f32 0.0, %v291
    %293 = vmatmul.f32.gmra.mxu0 %v62
    %v294 = vpop.f32.mrf.mxu0
    %v295 = vadd.f32 0.0, %v294
    %296 = vmatmul.f32.gmra.mxu0 %v63
    %v297 = vpop.f32.mrf.mxu0
    %v298 = vadd.f32 0.0, %v297
    %299 = vmatmul.f32.gmra.mxu0 %v64
    %v300 = vpop.f32.mrf.mxu0
    %v301 = vadd.f32 0.0, %v300
    %302 = vmatmul.f32.gmra.mxu0 %v65
    %v303 = vpop.f32.mrf.mxu0
    %v304 = vadd.f32 0.0, %v303
    %305 = vmatmul.f32.gmra.mxu0 %v66
    %v306 = vpop.f32.mrf.mxu0
    %v307 = vadd.f32 0.0, %v306
    %308 = vmatmul.f32.gmra.mxu0 %v67
    %v309 = vpop.f32.mrf.mxu0
    %v310 = vadd.f32 0.0, %v309
    %311 = vmatmul.f32.gmra.mxu0 %v68
    %v312 = vpop.f32.mrf.mxu0
    %v313 = vadd.f32 0.0, %v312
    %314 = vmatmul.f32.gmra.mxu0 %v69
    %v315 = vpop.f32.mrf.mxu0
    %v316 = vadd.f32 0.0, %v315
    %317 = vmatmul.f32.gmra.mxu0 %v70
    %v318 = vpop.f32.mrf.mxu0
    %v319 = vadd.f32 0.0, %v318
    %320 = vmatmul.f32.gmra.mxu0 %v71
    %v321 = vpop.f32.mrf.mxu0
    %v322 = vadd.f32 0.0, %v321
    %323 = vmatmul.f32.gmra.mxu0 %v72
    %v324 = vpop.f32.mrf.mxu0
    %v325 = vadd.f32 0.0, %v324
    %326 = vmatmul.f32.gmra.mxu0 %v73
    %v327 = vpop.f32.mrf.mxu0
    %v328 = vadd.f32 0.0, %v327
    %329 = vmatmul.f32.gmra.mxu0 %v74
    %v330 = vpop.f32.mrf.mxu0
    %v331 = vadd.f32 0.0, %v330
    %332 = vmatmul.f32.gmra.mxu0 %v75
    %v333 = vpop.f32.mrf.mxu0
    %v334 = vadd.f32 0.0, %v333
    %335 = vdwg.mxu0
    %v336 = vxor.u32 %v128, 2147483648
    %v337 = vxor.u32 %v241, 2147483648
    %v338 = vxor.u32 %v131, 2147483648
    %v339 = vxor.u32 %v244, 2147483648
    %v340 = vxor.u32 %v134, 2147483648
    %v341 = vxor.u32 %v247, 2147483648
    %v342 = vxor.u32 %v137, 2147483648
    %v343 = vxor.u32 %v250, 2147483648
    %v344 = vxor.u32 %v140, 2147483648
    %v345 = vxor.u32 %v253, 2147483648
    %v346 = vxor.u32 %v143, 2147483648
    %v347 = vxor.u32 %v256, 2147483648
    %v348 = vxor.u32 %v146, 2147483648
    %v349 = vxor.u32 %v259, 2147483648
    %v350 = vxor.u32 %v149, 2147483648
    %v351 = vxor.u32 %v262, 2147483648
    %v352 = vxor.u32 %v152, 2147483648
    %v353 = vxor.u32 %v265, 2147483648
    %v354 = vxor.u32 %v155, 2147483648
    %v355 = vxor.u32 %v268, 2147483648
    %v356 = vxor.u32 %v158, 2147483648
    %v357 = vxor.u32 %v271, 2147483648
    %v358 = vxor.u32 %v161, 2147483648
    %v359 = vxor.u32 %v274, 2147483648
    %v360 = vxor.u32 %v164, 2147483648
    %v361 = vxor.u32 %v277, 2147483648
    %v362 = vxor.u32 %v167, 2147483648
    %v363 = vxor.u32 %v280, 2147483648
    %v364 = vxor.u32 %v170, 2147483648
    %v365 = vxor.u32 %v283, 2147483648
    %v366 = vxor.u32 %v173, 2147483648
    %v367 = vxor.u32 %v286, 2147483648
    %v368 = vxor.u32 %v176, 2147483648
    %v369 = vxor.u32 %v289, 2147483648
    %v370 = vxor.u32 %v179, 2147483648
    %v371 = vxor.u32 %v292, 2147483648
    %v372 = vxor.u32 %v182, 2147483648
    %v373 = vxor.u32 %v295, 2147483648
    %v374 = vxor.u32 %v185, 2147483648
    %v375 = vxor.u32 %v298, 2147483648
    %v376 = vxor.u32 %v188, 2147483648
    %v377 = vxor.u32 %v301, 2147483648
    %v378 = vxor.u32 %v191, 2147483648
    %v379 = vxor.u32 %v304, 2147483648
    %v380 = vxor.u32 %v194, 2147483648
    %v381 = vxor.u32 %v307, 2147483648
    %v382 = vxor.u32 %v197, 2147483648
    %v383 = vxor.u32 %v310, 2147483648
    %v384 = vxor.u32 %v200, 2147483648
    %v385 = vxor.u32 %v313, 2147483648
    %v386 = vxor.u32 %v203, 2147483648
    %v387 = vxor.u32 %v316, 2147483648
    %v388 = vxor.u32 %v206, 2147483648
    %v389 = vxor.u32 %v319, 2147483648
    %v390 = vxor.u32 %v209, 2147483648
    %v391 = vxor.u32 %v322, 2147483648
    %v392 = vxor.u32 %v212, 2147483648
    %v393 = vxor.u32 %v325, 2147483648
    %v394 = vxor.u32 %v215, 2147483648
    %v395 = vxor.u32 %v328, 2147483648
    %v396 = vxor.u32 %v218, 2147483648
    %v397 = vxor.u32 %v331, 2147483648
    %v398 = vxor.u32 %v221, 2147483648
    %v399 = vxor.u32 %v334, 2147483648
    %v400 = vmul.f32 %v336, 1.442695
    %v401 = vpow.pop %v400
    %v402 = vmul.f32 %v337, 1.442695
    %v403 = vpow.pop %v402
    %v404 = vmul.f32 %v338, 1.442695
    %v405 = vpow.pop %v404
    %v406 = vmul.f32 %v339, 1.442695
    %v407 = vpow.pop %v406
    %v408 = vmul.f32 %v340, 1.442695
    %v409 = vpow.pop %v408
    %v410 = vmul.f32 %v341, 1.442695
    %v411 = vpow.pop %v410
    %v412 = vmul.f32 %v342, 1.442695
    %v413 = vpow.pop %v412
    %v414 = vmul.f32 %v343, 1.442695
    %v415 = vpow.pop %v414
    %v416 = vmul.f32 %v344, 1.442695
    %v417 = vpow.pop %v416
    %v418 = vmul.f32 %v345, 1.442695
    %v419 = vpow.pop %v418
    %v420 = vmul.f32 %v346, 1.442695
    %v421 = vpow.pop %v420
    %v422 = vmul.f32 %v347, 1.442695
    %v423 = vpow.pop %v422
    %v424 = vmul.f32 %v348, 1.442695
    %v425 = vpow.pop %v424
    %v426 = vmul.f32 %v349, 1.442695
    %v427 = vpow.pop %v426
    %v428 = vmul.f32 %v350, 1.442695
    %v429 = vpow.pop %v428
    %v430 = vmul.f32 %v351, 1.442695
    %v431 = vpow.pop %v430
    %v432 = vmul.f32 %v352, 1.442695
    %v433 = vpow.pop %v432
    %v434 = vmul.f32 %v353, 1.442695
    %v435 = vpow.pop %v434
    %v436 = vmul.f32 %v354, 1.442695
    %v437 = vpow.pop %v436
    %v438 = vmul.f32 %v355, 1.442695
    %v439 = vpow.pop %v438
    %v440 = vmul.f32 %v356, 1.442695
    %v441 = vpow.pop %v440
    %v442 = vmul.f32 %v357, 1.442695
    %v443 = vpow.pop %v442
    %v444 = vmul.f32 %v358, 1.442695
    %v445 = vpow.pop %v444
    %v446 = vmul.f32 %v359, 1.442695
    %v447 = vpow.pop %v446
    %v448 = vmul.f32 %v360, 1.442695
    %v449 = vpow.pop %v448
    %v450 = vmul.f32 %v361, 1.442695
    %v451 = vpow.pop %v450
    %v452 = vmul.f32 %v362, 1.442695
    %v453 = vpow.pop %v452
    %v454 = vmul.f32 %v363, 1.442695
    %v455 = vpow.pop %v454
    %v456 = vmul.f32 %v364, 1.442695
    %v457 = vpow.pop %v456
    %v458 = vmul.f32 %v365, 1.442695
    %v459 = vpow.pop %v458
    %v460 = vmul.f32 %v366, 1.442695
    %v461 = vpow.pop %v460
    %v462 = vmul.f32 %v367, 1.442695
    %v463 = vpow.pop %v462
    %v464 = vmul.f32 %v368, 1.442695
    %v465 = vpow.pop %v464
    %v466 = vmul.f32 %v369, 1.442695
    %v467 = vpow.pop %v466
    %v468 = vmul.f32 %v370, 1.442695
    %v469 = vpow.pop %v468
    %v470 = vmul.f32 %v371, 1.442695
    %v471 = vpow.pop %v470
    %v472 = vmul.f32 %v372, 1.442695
    %v473 = vpow.pop %v472
    %v474 = vmul.f32 %v373, 1.442695
    %v475 = vpow.pop %v474
    %v476 = vmul.f32 %v374, 1.442695
    %v477 = vpow.pop %v476
    %v478 = vmul.f32 %v375, 1.442695
    %v479 = vpow.pop %v478
    %v480 = vmul.f32 %v376, 1.442695
    %v481 = vpow.pop %v480
    %v482 = vmul.f32 %v377, 1.442695
    %v483 = vpow.pop %v482
    %v484 = vmul.f32 %v378, 1.442695
    %v485 = vpow.pop %v484
    %v486 = vmul.f32 %v379, 1.442695
    %v487 = vpow.pop %v486
    %v488 = vmul.f32 %v380, 1.442695
    %v489 = vpow.pop %v488
    %v490 = vmul.f32 %v381, 1.442695
    %v491 = vpow.pop %v490
    %v492 = vmul.f32 %v382, 1.442695
    %v493 = vpow.pop %v492
    %v494 = vmul.f32 %v383, 1.442695
    %v495 = vpow.pop %v494
    %v496 = vmul.f32 %v384, 1.442695
    %v497 = vpow.pop %v496
    %v498 = vmul.f32 %v385, 1.442695
    %v499 = vpow.pop %v498
    %v500 = vmul.f32 %v386, 1.442695
    %v501 = vpow.pop %v500
    %v502 = vmul.f32 %v387, 1.442695
    %v503 = vpow.pop %v502
    %v504 = vmul.f32 %v388, 1.442695
    %v505 = vpow.pop %v504
    %v506 = vmul.f32 %v389, 1.442695
    %v507 = vpow.pop %v506
    %v508 = vmul.f32 %v390, 1.442695
    %v509 = vpow.pop %v508
    %v510 = vmul.f32 %v391, 1.442695
    %v511 = vpow.pop %v510
    %v512 = vmul.f32 %v392, 1.442695
    %v513 = vpow.pop %v512
    %v514 = vmul.f32 %v393, 1.442695
    %v515 = vpow.pop %v514
    %v516 = vmul.f32 %v394, 1.442695
    %v517 = vpow.pop %v516
    %v518 = vmul.f32 %v395, 1.442695
    %v519 = vpow.pop %v518
    %v520 = vmul.f32 %v396, 1.442695
    %v521 = vpow.pop %v520
    %v522 = vmul.f32 %v397, 1.442695
    %v523 = vpow.pop %v522
    %v524 = vmul.f32 %v398, 1.442695
    %v525 = vpow.pop %v524
    %v526 = vmul.f32 %v399, 1.442695
    %v527 = vpow.pop %v526
    %v528 = vadd.f32 %v401, 1.0
    %v529 = vadd.f32 %v403, 1.0
    %v530 = vadd.f32 %v405, 1.0
    %v531 = vadd.f32 %v407, 1.0
    %v532 = vadd.f32 %v409, 1.0
    %v533 = vadd.f32 %v411, 1.0
    %v534 = vadd.f32 %v413, 1.0
    %v535 = vadd.f32 %v415, 1.0
    %v536 = vadd.f32 %v417, 1.0
    %v537 = vadd.f32 %v419, 1.0
    %v538 = vadd.f32 %v421, 1.0
    %v539 = vadd.f32 %v423, 1.0
    %v540 = vadd.f32 %v425, 1.0
    %v541 = vadd.f32 %v427, 1.0
    %v542 = vadd.f32 %v429, 1.0
    %v543 = vadd.f32 %v431, 1.0
    %v544 = vadd.f32 %v433, 1.0
    %v545 = vadd.f32 %v435, 1.0
    %v546 = vadd.f32 %v437, 1.0
    %v547 = vadd.f32 %v439, 1.0
    %v548 = vadd.f32 %v441, 1.0
    %v549 = vadd.f32 %v443, 1.0
    %v550 = vadd.f32 %v445, 1.0
    %v551 = vadd.f32 %v447, 1.0
    %v552 = vadd.f32 %v449, 1.0
    %v553 = vadd.f32 %v451, 1.0
    %v554 = vadd.f32 %v453, 1.0
    %v555 = vadd.f32 %v455, 1.0
    %v556 = vadd.f32 %v457, 1.0
    %v557 = vadd.f32 %v459, 1.0
    %v558 = vadd.f32 %v461, 1.0
    %v559 = vadd.f32 %v463, 1.0
    %v560 = vadd.f32 %v465, 1.0
    %v561 = vadd.f32 %v467, 1.0
    %v562 = vadd.f32 %v469, 1.0
    %v563 = vadd.f32 %v471, 1.0
    %v564 = vadd.f32 %v473, 1.0
    %v565 = vadd.f32 %v475, 1.0
    %v566 = vadd.f32 %v477, 1.0
    %v567 = vadd.f32 %v479, 1.0
    %v568 = vadd.f32 %v481, 1.0
    %v569 = vadd.f32 %v483, 1.0
    %v570 = vadd.f32 %v485, 1.0
    %v571 = vadd.f32 %v487, 1.0
    %v572 = vadd.f32 %v489, 1.0
    %v573 = vadd.f32 %v491, 1.0
    %v574 = vadd.f32 %v493, 1.0
    %v575 = vadd.f32 %v495, 1.0
    %v576 = vadd.f32 %v497, 1.0
    %v577 = vadd.f32 %v499, 1.0
    %v578 = vadd.f32 %v501, 1.0
    %v579 = vadd.f32 %v503, 1.0
    %v580 = vadd.f32 %v505, 1.0
    %v581 = vadd.f32 %v507, 1.0
    %v582 = vadd.f32 %v509, 1.0
    %v583 = vadd.f32 %v511, 1.0
    %v584 = vadd.f32 %v513, 1.0
    %v585 = vadd.f32 %v515, 1.0
    %v586 = vadd.f32 %v517, 1.0
    %v587 = vadd.f32 %v519, 1.0
    %v588 = vadd.f32 %v521, 1.0
    %v589 = vadd.f32 %v523, 1.0
    %v590 = vadd.f32 %v525, 1.0
    %v591 = vadd.f32 %v527, 1.0
    %v592 = vrcp.pop %v528
    %v593 = vmul.f32 %v528, %v592
    %v594 = vsub.f32 1.0, %v593
    %v595 = vmul.f32 %v592, %v594
    %v596 = vadd.f32 %v592, %v595
    %vm597 = vweird.f32 %v528
    %vm598 = vweird.f32 %v592
    %vm599 = vmor %vm597, %vm598
    %v600 = vsel %vm599, %v592, %v596
    %v601 = vand.u32 2147483647, %v528
    %vm602 = vcmp.eq.f32.partialorder %v601, 8.507059e+37
    %v603 = vand.u32 %v528, 2147483648
    %v604 = vor.u32 1.1754944e-38, %v603
    %v605 = vsel %vm602, %v604, %v600
    %v606 = vmul.f32 1.0, %v605
    %v607 = vrcp.pop %v529
    %v608 = vmul.f32 %v529, %v607
    %v609 = vsub.f32 1.0, %v608
    %v610 = vmul.f32 %v607, %v609
    %v611 = vadd.f32 %v607, %v610
    %vm612 = vweird.f32 %v529
    %vm613 = vweird.f32 %v607
    %vm614 = vmor %vm612, %vm613
    %v615 = vsel %vm614, %v607, %v611
    %v616 = vand.u32 2147483647, %v529
    %vm617 = vcmp.eq.f32.partialorder %v616, 8.507059e+37
    %v618 = vand.u32 %v529, 2147483648
    %v619 = vor.u32 1.1754944e-38, %v618
    %v620 = vsel %vm617, %v619, %v615
    %v621 = vmul.f32 1.0, %v620
    %v622 = vrcp.pop %v530
    %v623 = vmul.f32 %v530, %v622
    %v624 = vsub.f32 1.0, %v623
    %v625 = vmul.f32 %v622, %v624
    %v626 = vadd.f32 %v622, %v625
    %vm627 = vweird.f32 %v530
    %vm628 = vweird.f32 %v622
    %vm629 = vmor %vm627, %vm628
    %v630 = vsel %vm629, %v622, %v626
    %v631 = vand.u32 2147483647, %v530
    %vm632 = vcmp.eq.f32.partialorder %v631, 8.507059e+37
    %v633 = vand.u32 %v530, 2147483648
    %v634 = vor.u32 1.1754944e-38, %v633
    %v635 = vsel %vm632, %v634, %v630
    %v636 = vmul.f32 1.0, %v635
    %v637 = vrcp.pop %v531
    %v638 = vmul.f32 %v531, %v637
    %v639 = vsub.f32 1.0, %v638
    %v640 = vmul.f32 %v637, %v639
    %v641 = vadd.f32 %v637, %v640
    %vm642 = vweird.f32 %v531
    %vm643 = vweird.f32 %v637
    %vm644 = vmor %vm642, %vm643
    %v645 = vsel %vm644, %v637, %v641
    %v646 = vand.u32 2147483647, %v531
    %vm647 = vcmp.eq.f32.partialorder %v646, 8.507059e+37
    %v648 = vand.u32 %v531, 2147483648
    %v649 = vor.u32 1.1754944e-38, %v648
    %v650 = vsel %vm647, %v649, %v645
    %v651 = vmul.f32 1.0, %v650
    %v652 = vrcp.pop %v532
    %v653 = vmul.f32 %v532, %v652
    %v654 = vsub.f32 1.0, %v653
    %v655 = vmul.f32 %v652, %v654
    %v656 = vadd.f32 %v652, %v655
    %vm657 = vweird.f32 %v532
    %vm658 = vweird.f32 %v652
    %vm659 = vmor %vm657, %vm658
    %v660 = vsel %vm659, %v652, %v656
    %v661 = vand.u32 2147483647, %v532
    %vm662 = vcmp.eq.f32.partialorder %v661, 8.507059e+37
    %v663 = vand.u32 %v532, 2147483648
    %v664 = vor.u32 1.1754944e-38, %v663
    %v665 = vsel %vm662, %v664, %v660
    %v666 = vmul.f32 1.0, %v665
    %v667 = vrcp.pop %v533
    %v668 = vmul.f32 %v533, %v667
    %v669 = vsub.f32 1.0, %v668
    %v670 = vmul.f32 %v667, %v669
    %v671 = vadd.f32 %v667, %v670
    %vm672 = vweird.f32 %v533
    %vm673 = vweird.f32 %v667
    %vm674 = vmor %vm672, %vm673
    %v675 = vsel %vm674, %v667, %v671
    %v676 = vand.u32 2147483647, %v533
    %vm677 = vcmp.eq.f32.partialorder %v676, 8.507059e+37
    %v678 = vand.u32 %v533, 2147483648
    %v679 = vor.u32 1.1754944e-38, %v678
    %v680 = vsel %vm677, %v679, %v675
    %v681 = vmul.f32 1.0, %v680
    %v682 = vrcp.pop %v534
    %v683 = vmul.f32 %v534, %v682
    %v684 = vsub.f32 1.0, %v683
    %v685 = vmul.f32 %v682, %v684
    %v686 = vadd.f32 %v682, %v685
    %vm687 = vweird.f32 %v534
    %vm688 = vweird.f32 %v682
    %vm689 = vmor %vm687, %vm688
    %v690 = vsel %vm689, %v682, %v686
    %v691 = vand.u32 2147483647, %v534
    %vm692 = vcmp.eq.f32.partialorder %v691, 8.507059e+37
    %v693 = vand.u32 %v534, 2147483648
    %v694 = vor.u32 1.1754944e-38, %v693
    %v695 = vsel %vm692, %v694, %v690
    %v696 = vmul.f32 1.0, %v695
    %v697 = vrcp.pop %v535
    %v698 = vmul.f32 %v535, %v697
    %v699 = vsub.f32 1.0, %v698
    %v700 = vmul.f32 %v697, %v699
    %v701 = vadd.f32 %v697, %v700
    %vm702 = vweird.f32 %v535
    %vm703 = vweird.f32 %v697
    %vm704 = vmor %vm702, %vm703
    %v705 = vsel %vm704, %v697, %v701
    %v706 = vand.u32 2147483647, %v535
    %vm707 = vcmp.eq.f32.partialorder %v706, 8.507059e+37
    %v708 = vand.u32 %v535, 2147483648
    %v709 = vor.u32 1.1754944e-38, %v708
    %v710 = vsel %vm707, %v709, %v705
    %v711 = vmul.f32 1.0, %v710
    %v712 = vrcp.pop %v536
    %v713 = vmul.f32 %v536, %v712
    %v714 = vsub.f32 1.0, %v713
    %v715 = vmul.f32 %v712, %v714
    %v716 = vadd.f32 %v712, %v715
    %vm717 = vweird.f32 %v536
    %vm718 = vweird.f32 %v712
    %vm719 = vmor %vm717, %vm718
    %v720 = vsel %vm719, %v712, %v716
    %v721 = vand.u32 2147483647, %v536
    %vm722 = vcmp.eq.f32.partialorder %v721, 8.507059e+37
    %v723 = vand.u32 %v536, 2147483648
    %v724 = vor.u32 1.1754944e-38, %v723
    %v725 = vsel %vm722, %v724, %v720
    %v726 = vmul.f32 1.0, %v725
    %v727 = vrcp.pop %v537
    %v728 = vmul.f32 %v537, %v727
    %v729 = vsub.f32 1.0, %v728
    %v730 = vmul.f32 %v727, %v729
    %v731 = vadd.f32 %v727, %v730
    %vm732 = vweird.f32 %v537
    %vm733 = vweird.f32 %v727
    %vm734 = vmor %vm732, %vm733
    %v735 = vsel %vm734, %v727, %v731
    %v736 = vand.u32 2147483647, %v537
    %vm737 = vcmp.eq.f32.partialorder %v736, 8.507059e+37
    %v738 = vand.u32 %v537, 2147483648
    %v739 = vor.u32 1.1754944e-38, %v738
    %v740 = vsel %vm737, %v739, %v735
    %v741 = vmul.f32 1.0, %v740
    %v742 = vrcp.pop %v538
    %v743 = vmul.f32 %v538, %v742
    %v744 = vsub.f32 1.0, %v743
    %v745 = vmul.f32 %v742, %v744
    %v746 = vadd.f32 %v742, %v745
    %vm747 = vweird.f32 %v538
    %vm748 = vweird.f32 %v742
    %vm749 = vmor %vm747, %vm748
    %v750 = vsel %vm749, %v742, %v746
    %v751 = vand.u32 2147483647, %v538
    %vm752 = vcmp.eq.f32.partialorder %v751, 8.507059e+37
    %v753 = vand.u32 %v538, 2147483648
    %v754 = vor.u32 1.1754944e-38, %v753
    %v755 = vsel %vm752, %v754, %v750
    %v756 = vmul.f32 1.0, %v755
    %v757 = vrcp.pop %v539
    %v758 = vmul.f32 %v539, %v757
    %v759 = vsub.f32 1.0, %v758
    %v760 = vmul.f32 %v757, %v759
    %v761 = vadd.f32 %v757, %v760
    %vm762 = vweird.f32 %v539
    %vm763 = vweird.f32 %v757
    %vm764 = vmor %vm762, %vm763
    %v765 = vsel %vm764, %v757, %v761
    %v766 = vand.u32 2147483647, %v539
    %vm767 = vcmp.eq.f32.partialorder %v766, 8.507059e+37
    %v768 = vand.u32 %v539, 2147483648
    %v769 = vor.u32 1.1754944e-38, %v768
    %v770 = vsel %vm767, %v769, %v765
    %v771 = vmul.f32 1.0, %v770
    %v772 = vrcp.pop %v540
    %v773 = vmul.f32 %v540, %v772
    %v774 = vsub.f32 1.0, %v773
    %v775 = vmul.f32 %v772, %v774
    %v776 = vadd.f32 %v772, %v775
    %vm777 = vweird.f32 %v540
    %vm778 = vweird.f32 %v772
    %vm779 = vmor %vm777, %vm778
    %v780 = vsel %vm779, %v772, %v776
    %v781 = vand.u32 2147483647, %v540
    %vm782 = vcmp.eq.f32.partialorder %v781, 8.507059e+37
    %v783 = vand.u32 %v540, 2147483648
    %v784 = vor.u32 1.1754944e-38, %v783
    %v785 = vsel %vm782, %v784, %v780
    %v786 = vmul.f32 1.0, %v785
    %v787 = vrcp.pop %v541
    %v788 = vmul.f32 %v541, %v787
    %v789 = vsub.f32 1.0, %v788
    %v790 = vmul.f32 %v787, %v789
    %v791 = vadd.f32 %v787, %v790
    %vm792 = vweird.f32 %v541
    %vm793 = vweird.f32 %v787
    %vm794 = vmor %vm792, %vm793
    %v795 = vsel %vm794, %v787, %v791
    %v796 = vand.u32 2147483647, %v541
    %vm797 = vcmp.eq.f32.partialorder %v796, 8.507059e+37
    %v798 = vand.u32 %v541, 2147483648
    %v799 = vor.u32 1.1754944e-38, %v798
    %v800 = vsel %vm797, %v799, %v795
    %v801 = vmul.f32 1.0, %v800
    %v802 = vrcp.pop %v542
    %v803 = vmul.f32 %v542, %v802
    %v804 = vsub.f32 1.0, %v803
    %v805 = vmul.f32 %v802, %v804
    %v806 = vadd.f32 %v802, %v805
    %vm807 = vweird.f32 %v542
    %vm808 = vweird.f32 %v802
    %vm809 = vmor %vm807, %vm808
    %v810 = vsel %vm809, %v802, %v806
    %v811 = vand.u32 2147483647, %v542
    %vm812 = vcmp.eq.f32.partialorder %v811, 8.507059e+37
    %v813 = vand.u32 %v542, 2147483648
    %v814 = vor.u32 1.1754944e-38, %v813
    %v815 = vsel %vm812, %v814, %v810
    %v816 = vmul.f32 1.0, %v815
    %v817 = vrcp.pop %v543
    %v818 = vmul.f32 %v543, %v817
    %v819 = vsub.f32 1.0, %v818
    %v820 = vmul.f32 %v817, %v819
    %v821 = vadd.f32 %v817, %v820
    %vm822 = vweird.f32 %v543
    %vm823 = vweird.f32 %v817
    %vm824 = vmor %vm822, %vm823
    %v825 = vsel %vm824, %v817, %v821
    %v826 = vand.u32 2147483647, %v543
    %vm827 = vcmp.eq.f32.partialorder %v826, 8.507059e+37
    %v828 = vand.u32 %v543, 2147483648
    %v829 = vor.u32 1.1754944e-38, %v828
    %v830 = vsel %vm827, %v829, %v825
    %v831 = vmul.f32 1.0, %v830
    %v832 = vrcp.pop %v544
    %v833 = vmul.f32 %v544, %v832
    %v834 = vsub.f32 1.0, %v833
    %v835 = vmul.f32 %v832, %v834
    %v836 = vadd.f32 %v832, %v835
    %vm837 = vweird.f32 %v544
    %vm838 = vweird.f32 %v832
    %vm839 = vmor %vm837, %vm838
    %v840 = vsel %vm839, %v832, %v836
    %v841 = vand.u32 2147483647, %v544
    %vm842 = vcmp.eq.f32.partialorder %v841, 8.507059e+37
    %v843 = vand.u32 %v544, 2147483648
    %v844 = vor.u32 1.1754944e-38, %v843
    %v845 = vsel %vm842, %v844, %v840
    %v846 = vmul.f32 1.0, %v845
    %v847 = vrcp.pop %v545
    %v848 = vmul.f32 %v545, %v847
    %v849 = vsub.f32 1.0, %v848
    %v850 = vmul.f32 %v847, %v849
    %v851 = vadd.f32 %v847, %v850
    %vm852 = vweird.f32 %v545
    %vm853 = vweird.f32 %v847
    %vm854 = vmor %vm852, %vm853
    %v855 = vsel %vm854, %v847, %v851
    %v856 = vand.u32 2147483647, %v545
    %vm857 = vcmp.eq.f32.partialorder %v856, 8.507059e+37
    %v858 = vand.u32 %v545, 2147483648
    %v859 = vor.u32 1.1754944e-38, %v858
    %v860 = vsel %vm857, %v859, %v855
    %v861 = vmul.f32 1.0, %v860
    %v862 = vrcp.pop %v546
    %v863 = vmul.f32 %v546, %v862
    %v864 = vsub.f32 1.0, %v863
    %v865 = vmul.f32 %v862, %v864
    %v866 = vadd.f32 %v862, %v865
    %vm867 = vweird.f32 %v546
    %vm868 = vweird.f32 %v862
    %vm869 = vmor %vm867, %vm868
    %v870 = vsel %vm869, %v862, %v866
    %v871 = vand.u32 2147483647, %v546
    %vm872 = vcmp.eq.f32.partialorder %v871, 8.507059e+37
    %v873 = vand.u32 %v546, 2147483648
    %v874 = vor.u32 1.1754944e-38, %v873
    %v875 = vsel %vm872, %v874, %v870
    %v876 = vmul.f32 1.0, %v875
    %v877 = vrcp.pop %v547
    %v878 = vmul.f32 %v547, %v877
    %v879 = vsub.f32 1.0, %v878
    %v880 = vmul.f32 %v877, %v879
    %v881 = vadd.f32 %v877, %v880
    %vm882 = vweird.f32 %v547
    %vm883 = vweird.f32 %v877
    %vm884 = vmor %vm882, %vm883
    %v885 = vsel %vm884, %v877, %v881
    %v886 = vand.u32 2147483647, %v547
    %vm887 = vcmp.eq.f32.partialorder %v886, 8.507059e+37
    %v888 = vand.u32 %v547, 2147483648
    %v889 = vor.u32 1.1754944e-38, %v888
    %v890 = vsel %vm887, %v889, %v885
    %v891 = vmul.f32 1.0, %v890
    %v892 = vrcp.pop %v548
    %v893 = vmul.f32 %v548, %v892
    %v894 = vsub.f32 1.0, %v893
    %v895 = vmul.f32 %v892, %v894
    %v896 = vadd.f32 %v892, %v895
    %vm897 = vweird.f32 %v548
    %vm898 = vweird.f32 %v892
    %vm899 = vmor %vm897, %vm898
    %v900 = vsel %vm899, %v892, %v896
    %v901 = vand.u32 2147483647, %v548
    %vm902 = vcmp.eq.f32.partialorder %v901, 8.507059e+37
    %v903 = vand.u32 %v548, 2147483648
    %v904 = vor.u32 1.1754944e-38, %v903
    %v905 = vsel %vm902, %v904, %v900
    %v906 = vmul.f32 1.0, %v905
    %v907 = vrcp.pop %v549
    %v908 = vmul.f32 %v549, %v907
    %v909 = vsub.f32 1.0, %v908
    %v910 = vmul.f32 %v907, %v909
    %v911 = vadd.f32 %v907, %v910
    %vm912 = vweird.f32 %v549
    %vm913 = vweird.f32 %v907
    %vm914 = vmor %vm912, %vm913
    %v915 = vsel %vm914, %v907, %v911
    %v916 = vand.u32 2147483647, %v549
    %vm917 = vcmp.eq.f32.partialorder %v916, 8.507059e+37
    %v918 = vand.u32 %v549, 2147483648
    %v919 = vor.u32 1.1754944e-38, %v918
    %v920 = vsel %vm917, %v919, %v915
    %v921 = vmul.f32 1.0, %v920
    %v922 = vrcp.pop %v550
    %v923 = vmul.f32 %v550, %v922
    %v924 = vsub.f32 1.0, %v923
    %v925 = vmul.f32 %v922, %v924
    %v926 = vadd.f32 %v922, %v925
    %vm927 = vweird.f32 %v550
    %vm928 = vweird.f32 %v922
    %vm929 = vmor %vm927, %vm928
    %v930 = vsel %vm929, %v922, %v926
    %v931 = vand.u32 2147483647, %v550
    %vm932 = vcmp.eq.f32.partialorder %v931, 8.507059e+37
    %v933 = vand.u32 %v550, 2147483648
    %v934 = vor.u32 1.1754944e-38, %v933
    %v935 = vsel %vm932, %v934, %v930
    %v936 = vmul.f32 1.0, %v935
    %v937 = vrcp.pop %v551
    %v938 = vmul.f32 %v551, %v937
    %v939 = vsub.f32 1.0, %v938
    %v940 = vmul.f32 %v937, %v939
    %v941 = vadd.f32 %v937, %v940
    %vm942 = vweird.f32 %v551
    %vm943 = vweird.f32 %v937
    %vm944 = vmor %vm942, %vm943
    %v945 = vsel %vm944, %v937, %v941
    %v946 = vand.u32 2147483647, %v551
    %vm947 = vcmp.eq.f32.partialorder %v946, 8.507059e+37
    %v948 = vand.u32 %v551, 2147483648
    %v949 = vor.u32 1.1754944e-38, %v948
    %v950 = vsel %vm947, %v949, %v945
    %v951 = vmul.f32 1.0, %v950
    %v952 = vrcp.pop %v552
    %v953 = vmul.f32 %v552, %v952
    %v954 = vsub.f32 1.0, %v953
    %v955 = vmul.f32 %v952, %v954
    %v956 = vadd.f32 %v952, %v955
    %vm957 = vweird.f32 %v552
    %vm958 = vweird.f32 %v952
    %vm959 = vmor %vm957, %vm958
    %v960 = vsel %vm959, %v952, %v956
    %v961 = vand.u32 2147483647, %v552
    %vm962 = vcmp.eq.f32.partialorder %v961, 8.507059e+37
    %v963 = vand.u32 %v552, 2147483648
    %v964 = vor.u32 1.1754944e-38, %v963
    %v965 = vsel %vm962, %v964, %v960
    %v966 = vmul.f32 1.0, %v965
    %v967 = vrcp.pop %v553
    %v968 = vmul.f32 %v553, %v967
    %v969 = vsub.f32 1.0, %v968
    %v970 = vmul.f32 %v967, %v969
    %v971 = vadd.f32 %v967, %v970
    %vm972 = vweird.f32 %v553
    %vm973 = vweird.f32 %v967
    %vm974 = vmor %vm972, %vm973
    %v975 = vsel %vm974, %v967, %v971
    %v976 = vand.u32 2147483647, %v553
    %vm977 = vcmp.eq.f32.partialorder %v976, 8.507059e+37
    %v978 = vand.u32 %v553, 2147483648
    %v979 = vor.u32 1.1754944e-38, %v978
    %v980 = vsel %vm977, %v979, %v975
    %v981 = vmul.f32 1.0, %v980
    %v982 = vrcp.pop %v554
    %v983 = vmul.f32 %v554, %v982
    %v984 = vsub.f32 1.0, %v983
    %v985 = vmul.f32 %v982, %v984
    %v986 = vadd.f32 %v982, %v985
    %vm987 = vweird.f32 %v554
    %vm988 = vweird.f32 %v982
    %vm989 = vmor %vm987, %vm988
    %v990 = vsel %vm989, %v982, %v986
    %v991 = vand.u32 2147483647, %v554
    %vm992 = vcmp.eq.f32.partialorder %v991, 8.507059e+37
    %v993 = vand.u32 %v554, 2147483648
    %v994 = vor.u32 1.1754944e-38, %v993
    %v995 = vsel %vm992, %v994, %v990
    %v996 = vmul.f32 1.0, %v995
    %v997 = vrcp.pop %v555
    %v998 = vmul.f32 %v555, %v997
    %v999 = vsub.f32 1.0, %v998
    %v1000 = vmul.f32 %v997, %v999
    %v1001 = vadd.f32 %v997, %v1000
    %vm1002 = vweird.f32 %v555
    %vm1003 = vweird.f32 %v997
    %vm1004 = vmor %vm1002, %vm1003
    %v1005 = vsel %vm1004, %v997, %v1001
    %v1006 = vand.u32 2147483647, %v555
    %vm1007 = vcmp.eq.f32.partialorder %v1006, 8.507059e+37
    %v1008 = vand.u32 %v555, 2147483648
    %v1009 = vor.u32 1.1754944e-38, %v1008
    %v1010 = vsel %vm1007, %v1009, %v1005
    %v1011 = vmul.f32 1.0, %v1010
    %v1012 = vrcp.pop %v556
    %v1013 = vmul.f32 %v556, %v1012
    %v1014 = vsub.f32 1.0, %v1013
    %v1015 = vmul.f32 %v1012, %v1014
    %v1016 = vadd.f32 %v1012, %v1015
    %vm1017 = vweird.f32 %v556
    %vm1018 = vweird.f32 %v1012
    %vm1019 = vmor %vm1017, %vm1018
    %v1020 = vsel %vm1019, %v1012, %v1016
    %v1021 = vand.u32 2147483647, %v556
    %vm1022 = vcmp.eq.f32.partialorder %v1021, 8.507059e+37
    %v1023 = vand.u32 %v556, 2147483648
    %v1024 = vor.u32 1.1754944e-38, %v1023
    %v1025 = vsel %vm1022, %v1024, %v1020
    %v1026 = vmul.f32 1.0, %v1025
    %v1027 = vrcp.pop %v557
    %v1028 = vmul.f32 %v557, %v1027
    %v1029 = vsub.f32 1.0, %v1028
    %v1030 = vmul.f32 %v1027, %v1029
    %v1031 = vadd.f32 %v1027, %v1030
    %vm1032 = vweird.f32 %v557
    %vm1033 = vweird.f32 %v1027
    %vm1034 = vmor %vm1032, %vm1033
    %v1035 = vsel %vm1034, %v1027, %v1031
    %v1036 = vand.u32 2147483647, %v557
    %vm1037 = vcmp.eq.f32.partialorder %v1036, 8.507059e+37
    %v1038 = vand.u32 %v557, 2147483648
    %v1039 = vor.u32 1.1754944e-38, %v1038
    %v1040 = vsel %vm1037, %v1039, %v1035
    %v1041 = vmul.f32 1.0, %v1040
    %v1042 = vrcp.pop %v558
    %v1043 = vmul.f32 %v558, %v1042
    %v1044 = vsub.f32 1.0, %v1043
    %v1045 = vmul.f32 %v1042, %v1044
    %v1046 = vadd.f32 %v1042, %v1045
    %vm1047 = vweird.f32 %v558
    %vm1048 = vweird.f32 %v1042
    %vm1049 = vmor %vm1047, %vm1048
    %v1050 = vsel %vm1049, %v1042, %v1046
    %v1051 = vand.u32 2147483647, %v558
    %vm1052 = vcmp.eq.f32.partialorder %v1051, 8.507059e+37
    %v1053 = vand.u32 %v558, 2147483648
    %v1054 = vor.u32 1.1754944e-38, %v1053
    %v1055 = vsel %vm1052, %v1054, %v1050
    %v1056 = vmul.f32 1.0, %v1055
    %v1057 = vrcp.pop %v559
    %v1058 = vmul.f32 %v559, %v1057
    %v1059 = vsub.f32 1.0, %v1058
    %v1060 = vmul.f32 %v1057, %v1059
    %v1061 = vadd.f32 %v1057, %v1060
    %vm1062 = vweird.f32 %v559
    %vm1063 = vweird.f32 %v1057
    %vm1064 = vmor %vm1062, %vm1063
    %v1065 = vsel %vm1064, %v1057, %v1061
    %v1066 = vand.u32 2147483647, %v559
    %vm1067 = vcmp.eq.f32.partialorder %v1066, 8.507059e+37
    %v1068 = vand.u32 %v559, 2147483648
    %v1069 = vor.u32 1.1754944e-38, %v1068
    %v1070 = vsel %vm1067, %v1069, %v1065
    %v1071 = vmul.f32 1.0, %v1070
    %v1072 = vrcp.pop %v560
    %v1073 = vmul.f32 %v560, %v1072
    %v1074 = vsub.f32 1.0, %v1073
    %v1075 = vmul.f32 %v1072, %v1074
    %v1076 = vadd.f32 %v1072, %v1075
    %vm1077 = vweird.f32 %v560
    %vm1078 = vweird.f32 %v1072
    %vm1079 = vmor %vm1077, %vm1078
    %v1080 = vsel %vm1079, %v1072, %v1076
    %v1081 = vand.u32 2147483647, %v560
    %vm1082 = vcmp.eq.f32.partialorder %v1081, 8.507059e+37
    %v1083 = vand.u32 %v560, 2147483648
    %v1084 = vor.u32 1.1754944e-38, %v1083
    %v1085 = vsel %vm1082, %v1084, %v1080
    %v1086 = vmul.f32 1.0, %v1085
    %v1087 = vrcp.pop %v561
    %v1088 = vmul.f32 %v561, %v1087
    %v1089 = vsub.f32 1.0, %v1088
    %v1090 = vmul.f32 %v1087, %v1089
    %v1091 = vadd.f32 %v1087, %v1090
    %vm1092 = vweird.f32 %v561
    %vm1093 = vweird.f32 %v1087
    %vm1094 = vmor %vm1092, %vm1093
    %v1095 = vsel %vm1094, %v1087, %v1091
    %v1096 = vand.u32 2147483647, %v561
    %vm1097 = vcmp.eq.f32.partialorder %v1096, 8.507059e+37
    %v1098 = vand.u32 %v561, 2147483648
    %v1099 = vor.u32 1.1754944e-38, %v1098
    %v1100 = vsel %vm1097, %v1099, %v1095
    %v1101 = vmul.f32 1.0, %v1100
    %v1102 = vrcp.pop %v562
    %v1103 = vmul.f32 %v562, %v1102
    %v1104 = vsub.f32 1.0, %v1103
    %v1105 = vmul.f32 %v1102, %v1104
    %v1106 = vadd.f32 %v1102, %v1105
    %vm1107 = vweird.f32 %v562
    %vm1108 = vweird.f32 %v1102
    %vm1109 = vmor %vm1107, %vm1108
    %v1110 = vsel %vm1109, %v1102, %v1106
    %v1111 = vand.u32 2147483647, %v562
    %vm1112 = vcmp.eq.f32.partialorder %v1111, 8.507059e+37
    %v1113 = vand.u32 %v562, 2147483648
    %v1114 = vor.u32 1.1754944e-38, %v1113
    %v1115 = vsel %vm1112, %v1114, %v1110
    %v1116 = vmul.f32 1.0, %v1115
    %v1117 = vrcp.pop %v563
    %v1118 = vmul.f32 %v563, %v1117
    %v1119 = vsub.f32 1.0, %v1118
    %v1120 = vmul.f32 %v1117, %v1119
    %v1121 = vadd.f32 %v1117, %v1120
    %vm1122 = vweird.f32 %v563
    %vm1123 = vweird.f32 %v1117
    %vm1124 = vmor %vm1122, %vm1123
    %v1125 = vsel %vm1124, %v1117, %v1121
    %v1126 = vand.u32 2147483647, %v563
    %vm1127 = vcmp.eq.f32.partialorder %v1126, 8.507059e+37
    %v1128 = vand.u32 %v563, 2147483648
    %v1129 = vor.u32 1.1754944e-38, %v1128
    %v1130 = vsel %vm1127, %v1129, %v1125
    %v1131 = vmul.f32 1.0, %v1130
    %v1132 = vrcp.pop %v564
    %v1133 = vmul.f32 %v564, %v1132
    %v1134 = vsub.f32 1.0, %v1133
    %v1135 = vmul.f32 %v1132, %v1134
    %v1136 = vadd.f32 %v1132, %v1135
    %vm1137 = vweird.f32 %v564
    %vm1138 = vweird.f32 %v1132
    %vm1139 = vmor %vm1137, %vm1138
    %v1140 = vsel %vm1139, %v1132, %v1136
    %v1141 = vand.u32 2147483647, %v564
    %vm1142 = vcmp.eq.f32.partialorder %v1141, 8.507059e+37
    %v1143 = vand.u32 %v564, 2147483648
    %v1144 = vor.u32 1.1754944e-38, %v1143
    %v1145 = vsel %vm1142, %v1144, %v1140
    %v1146 = vmul.f32 1.0, %v1145
    %v1147 = vrcp.pop %v565
    %v1148 = vmul.f32 %v565, %v1147
    %v1149 = vsub.f32 1.0, %v1148
    %v1150 = vmul.f32 %v1147, %v1149
    %v1151 = vadd.f32 %v1147, %v1150
    %vm1152 = vweird.f32 %v565
    %vm1153 = vweird.f32 %v1147
    %vm1154 = vmor %vm1152, %vm1153
    %v1155 = vsel %vm1154, %v1147, %v1151
    %v1156 = vand.u32 2147483647, %v565
    %vm1157 = vcmp.eq.f32.partialorder %v1156, 8.507059e+37
    %v1158 = vand.u32 %v565, 2147483648
    %v1159 = vor.u32 1.1754944e-38, %v1158
    %v1160 = vsel %vm1157, %v1159, %v1155
    %v1161 = vmul.f32 1.0, %v1160
    %v1162 = vrcp.pop %v566
    %v1163 = vmul.f32 %v566, %v1162
    %v1164 = vsub.f32 1.0, %v1163
    %v1165 = vmul.f32 %v1162, %v1164
    %v1166 = vadd.f32 %v1162, %v1165
    %vm1167 = vweird.f32 %v566
    %vm1168 = vweird.f32 %v1162
    %vm1169 = vmor %vm1167, %vm1168
    %v1170 = vsel %vm1169, %v1162, %v1166
    %v1171 = vand.u32 2147483647, %v566
    %vm1172 = vcmp.eq.f32.partialorder %v1171, 8.507059e+37
    %v1173 = vand.u32 %v566, 2147483648
    %v1174 = vor.u32 1.1754944e-38, %v1173
    %v1175 = vsel %vm1172, %v1174, %v1170
    %v1176 = vmul.f32 1.0, %v1175
    %v1177 = vrcp.pop %v567
    %v1178 = vmul.f32 %v567, %v1177
    %v1179 = vsub.f32 1.0, %v1178
    %v1180 = vmul.f32 %v1177, %v1179
    %v1181 = vadd.f32 %v1177, %v1180
    %vm1182 = vweird.f32 %v567
    %vm1183 = vweird.f32 %v1177
    %vm1184 = vmor %vm1182, %vm1183
    %v1185 = vsel %vm1184, %v1177, %v1181
    %v1186 = vand.u32 2147483647, %v567
    %vm1187 = vcmp.eq.f32.partialorder %v1186, 8.507059e+37
    %v1188 = vand.u32 %v567, 2147483648
    %v1189 = vor.u32 1.1754944e-38, %v1188
    %v1190 = vsel %vm1187, %v1189, %v1185
    %v1191 = vmul.f32 1.0, %v1190
    %v1192 = vrcp.pop %v568
    %v1193 = vmul.f32 %v568, %v1192
    %v1194 = vsub.f32 1.0, %v1193
    %v1195 = vmul.f32 %v1192, %v1194
    %v1196 = vadd.f32 %v1192, %v1195
    %vm1197 = vweird.f32 %v568
    %vm1198 = vweird.f32 %v1192
    %vm1199 = vmor %vm1197, %vm1198
    %v1200 = vsel %vm1199, %v1192, %v1196
    %v1201 = vand.u32 2147483647, %v568
    %vm1202 = vcmp.eq.f32.partialorder %v1201, 8.507059e+37
    %v1203 = vand.u32 %v568, 2147483648
    %v1204 = vor.u32 1.1754944e-38, %v1203
    %v1205 = vsel %vm1202, %v1204, %v1200
    %v1206 = vmul.f32 1.0, %v1205
    %v1207 = vrcp.pop %v569
    %v1208 = vmul.f32 %v569, %v1207
    %v1209 = vsub.f32 1.0, %v1208
    %v1210 = vmul.f32 %v1207, %v1209
    %v1211 = vadd.f32 %v1207, %v1210
    %vm1212 = vweird.f32 %v569
    %vm1213 = vweird.f32 %v1207
    %vm1214 = vmor %vm1212, %vm1213
    %v1215 = vsel %vm1214, %v1207, %v1211
    %v1216 = vand.u32 2147483647, %v569
    %vm1217 = vcmp.eq.f32.partialorder %v1216, 8.507059e+37
    %v1218 = vand.u32 %v569, 2147483648
    %v1219 = vor.u32 1.1754944e-38, %v1218
    %v1220 = vsel %vm1217, %v1219, %v1215
    %v1221 = vmul.f32 1.0, %v1220
    %v1222 = vrcp.pop %v570
    %v1223 = vmul.f32 %v570, %v1222
    %v1224 = vsub.f32 1.0, %v1223
    %v1225 = vmul.f32 %v1222, %v1224
    %v1226 = vadd.f32 %v1222, %v1225
    %vm1227 = vweird.f32 %v570
    %vm1228 = vweird.f32 %v1222
    %vm1229 = vmor %vm1227, %vm1228
    %v1230 = vsel %vm1229, %v1222, %v1226
    %v1231 = vand.u32 2147483647, %v570
    %vm1232 = vcmp.eq.f32.partialorder %v1231, 8.507059e+37
    %v1233 = vand.u32 %v570, 2147483648
    %v1234 = vor.u32 1.1754944e-38, %v1233
    %v1235 = vsel %vm1232, %v1234, %v1230
    %v1236 = vmul.f32 1.0, %v1235
    %v1237 = vrcp.pop %v571
    %v1238 = vmul.f32 %v571, %v1237
    %v1239 = vsub.f32 1.0, %v1238
    %v1240 = vmul.f32 %v1237, %v1239
    %v1241 = vadd.f32 %v1237, %v1240
    %vm1242 = vweird.f32 %v571
    %vm1243 = vweird.f32 %v1237
    %vm1244 = vmor %vm1242, %vm1243
    %v1245 = vsel %vm1244, %v1237, %v1241
    %v1246 = vand.u32 2147483647, %v571
    %vm1247 = vcmp.eq.f32.partialorder %v1246, 8.507059e+37
    %v1248 = vand.u32 %v571, 2147483648
    %v1249 = vor.u32 1.1754944e-38, %v1248
    %v1250 = vsel %vm1247, %v1249, %v1245
    %v1251 = vmul.f32 1.0, %v1250
    %v1252 = vrcp.pop %v572
    %v1253 = vmul.f32 %v572, %v1252
    %v1254 = vsub.f32 1.0, %v1253
    %v1255 = vmul.f32 %v1252, %v1254
    %v1256 = vadd.f32 %v1252, %v1255
    %vm1257 = vweird.f32 %v572
    %vm1258 = vweird.f32 %v1252
    %vm1259 = vmor %vm1257, %vm1258
    %v1260 = vsel %vm1259, %v1252, %v1256
    %v1261 = vand.u32 2147483647, %v572
    %vm1262 = vcmp.eq.f32.partialorder %v1261, 8.507059e+37
    %v1263 = vand.u32 %v572, 2147483648
    %v1264 = vor.u32 1.1754944e-38, %v1263
    %v1265 = vsel %vm1262, %v1264, %v1260
    %v1266 = vmul.f32 1.0, %v1265
    %v1267 = vrcp.pop %v573
    %v1268 = vmul.f32 %v573, %v1267
    %v1269 = vsub.f32 1.0, %v1268
    %v1270 = vmul.f32 %v1267, %v1269
    %v1271 = vadd.f32 %v1267, %v1270
    %vm1272 = vweird.f32 %v573
    %vm1273 = vweird.f32 %v1267
    %vm1274 = vmor %vm1272, %vm1273
    %v1275 = vsel %vm1274, %v1267, %v1271
    %v1276 = vand.u32 2147483647, %v573
    %vm1277 = vcmp.eq.f32.partialorder %v1276, 8.507059e+37
    %v1278 = vand.u32 %v573, 2147483648
    %v1279 = vor.u32 1.1754944e-38, %v1278
    %v1280 = vsel %vm1277, %v1279, %v1275
    %v1281 = vmul.f32 1.0, %v1280
    %v1282 = vrcp.pop %v574
    %v1283 = vmul.f32 %v574, %v1282
    %v1284 = vsub.f32 1.0, %v1283
    %v1285 = vmul.f32 %v1282, %v1284
    %v1286 = vadd.f32 %v1282, %v1285
    %vm1287 = vweird.f32 %v574
    %vm1288 = vweird.f32 %v1282
    %vm1289 = vmor %vm1287, %vm1288
    %v1290 = vsel %vm1289, %v1282, %v1286
    %v1291 = vand.u32 2147483647, %v574
    %vm1292 = vcmp.eq.f32.partialorder %v1291, 8.507059e+37
    %v1293 = vand.u32 %v574, 2147483648
    %v1294 = vor.u32 1.1754944e-38, %v1293
    %v1295 = vsel %vm1292, %v1294, %v1290
    %v1296 = vmul.f32 1.0, %v1295
    %v1297 = vrcp.pop %v575
    %v1298 = vmul.f32 %v575, %v1297
    %v1299 = vsub.f32 1.0, %v1298
    %v1300 = vmul.f32 %v1297, %v1299
    %v1301 = vadd.f32 %v1297, %v1300
    %vm1302 = vweird.f32 %v575
    %vm1303 = vweird.f32 %v1297
    %vm1304 = vmor %vm1302, %vm1303
    %v1305 = vsel %vm1304, %v1297, %v1301
    %v1306 = vand.u32 2147483647, %v575
    %vm1307 = vcmp.eq.f32.partialorder %v1306, 8.507059e+37
    %v1308 = vand.u32 %v575, 2147483648
    %v1309 = vor.u32 1.1754944e-38, %v1308
    %v1310 = vsel %vm1307, %v1309, %v1305
    %v1311 = vmul.f32 1.0, %v1310
    %v1312 = vrcp.pop %v576
    %v1313 = vmul.f32 %v576, %v1312
    %v1314 = vsub.f32 1.0, %v1313
    %v1315 = vmul.f32 %v1312, %v1314
    %v1316 = vadd.f32 %v1312, %v1315
    %vm1317 = vweird.f32 %v576
    %vm1318 = vweird.f32 %v1312
    %vm1319 = vmor %vm1317, %vm1318
    %v1320 = vsel %vm1319, %v1312, %v1316
    %v1321 = vand.u32 2147483647, %v576
    %vm1322 = vcmp.eq.f32.partialorder %v1321, 8.507059e+37
    %v1323 = vand.u32 %v576, 2147483648
    %v1324 = vor.u32 1.1754944e-38, %v1323
    %v1325 = vsel %vm1322, %v1324, %v1320
    %v1326 = vmul.f32 1.0, %v1325
    %v1327 = vrcp.pop %v577
    %v1328 = vmul.f32 %v577, %v1327
    %v1329 = vsub.f32 1.0, %v1328
    %v1330 = vmul.f32 %v1327, %v1329
    %v1331 = vadd.f32 %v1327, %v1330
    %vm1332 = vweird.f32 %v577
    %vm1333 = vweird.f32 %v1327
    %vm1334 = vmor %vm1332, %vm1333
    %v1335 = vsel %vm1334, %v1327, %v1331
    %v1336 = vand.u32 2147483647, %v577
    %vm1337 = vcmp.eq.f32.partialorder %v1336, 8.507059e+37
    %v1338 = vand.u32 %v577, 2147483648
    %v1339 = vor.u32 1.1754944e-38, %v1338
    %v1340 = vsel %vm1337, %v1339, %v1335
    %v1341 = vmul.f32 1.0, %v1340
    %v1342 = vrcp.pop %v578
    %v1343 = vmul.f32 %v578, %v1342
    %v1344 = vsub.f32 1.0, %v1343
    %v1345 = vmul.f32 %v1342, %v1344
    %v1346 = vadd.f32 %v1342, %v1345
    %vm1347 = vweird.f32 %v578
    %vm1348 = vweird.f32 %v1342
    %vm1349 = vmor %vm1347, %vm1348
    %v1350 = vsel %vm1349, %v1342, %v1346
    %v1351 = vand.u32 2147483647, %v578
    %vm1352 = vcmp.eq.f32.partialorder %v1351, 8.507059e+37
    %v1353 = vand.u32 %v578, 2147483648
    %v1354 = vor.u32 1.1754944e-38, %v1353
    %v1355 = vsel %vm1352, %v1354, %v1350
    %v1356 = vmul.f32 1.0, %v1355
    %v1357 = vrcp.pop %v579
    %v1358 = vmul.f32 %v579, %v1357
    %v1359 = vsub.f32 1.0, %v1358
    %v1360 = vmul.f32 %v1357, %v1359
    %v1361 = vadd.f32 %v1357, %v1360
    %vm1362 = vweird.f32 %v579
    %vm1363 = vweird.f32 %v1357
    %vm1364 = vmor %vm1362, %vm1363
    %v1365 = vsel %vm1364, %v1357, %v1361
    %v1366 = vand.u32 2147483647, %v579
    %vm1367 = vcmp.eq.f32.partialorder %v1366, 8.507059e+37
    %v1368 = vand.u32 %v579, 2147483648
    %v1369 = vor.u32 1.1754944e-38, %v1368
    %v1370 = vsel %vm1367, %v1369, %v1365
    %v1371 = vmul.f32 1.0, %v1370
    %v1372 = vrcp.pop %v580
    %v1373 = vmul.f32 %v580, %v1372
    %v1374 = vsub.f32 1.0, %v1373
    %v1375 = vmul.f32 %v1372, %v1374
    %v1376 = vadd.f32 %v1372, %v1375
    %vm1377 = vweird.f32 %v580
    %vm1378 = vweird.f32 %v1372
    %vm1379 = vmor %vm1377, %vm1378
    %v1380 = vsel %vm1379, %v1372, %v1376
    %v1381 = vand.u32 2147483647, %v580
    %vm1382 = vcmp.eq.f32.partialorder %v1381, 8.507059e+37
    %v1383 = vand.u32 %v580, 2147483648
    %v1384 = vor.u32 1.1754944e-38, %v1383
    %v1385 = vsel %vm1382, %v1384, %v1380
    %v1386 = vmul.f32 1.0, %v1385
    %v1387 = vrcp.pop %v581
    %v1388 = vmul.f32 %v581, %v1387
    %v1389 = vsub.f32 1.0, %v1388
    %v1390 = vmul.f32 %v1387, %v1389
    %v1391 = vadd.f32 %v1387, %v1390
    %vm1392 = vweird.f32 %v581
    %vm1393 = vweird.f32 %v1387
    %vm1394 = vmor %vm1392, %vm1393
    %v1395 = vsel %vm1394, %v1387, %v1391
    %v1396 = vand.u32 2147483647, %v581
    %vm1397 = vcmp.eq.f32.partialorder %v1396, 8.507059e+37
    %v1398 = vand.u32 %v581, 2147483648
    %v1399 = vor.u32 1.1754944e-38, %v1398
    %v1400 = vsel %vm1397, %v1399, %v1395
    %v1401 = vmul.f32 1.0, %v1400
    %v1402 = vrcp.pop %v582
    %v1403 = vmul.f32 %v582, %v1402
    %v1404 = vsub.f32 1.0, %v1403
    %v1405 = vmul.f32 %v1402, %v1404
    %v1406 = vadd.f32 %v1402, %v1405
    %vm1407 = vweird.f32 %v582
    %vm1408 = vweird.f32 %v1402
    %vm1409 = vmor %vm1407, %vm1408
    %v1410 = vsel %vm1409, %v1402, %v1406
    %v1411 = vand.u32 2147483647, %v582
    %vm1412 = vcmp.eq.f32.partialorder %v1411, 8.507059e+37
    %v1413 = vand.u32 %v582, 2147483648
    %v1414 = vor.u32 1.1754944e-38, %v1413
    %v1415 = vsel %vm1412, %v1414, %v1410
    %v1416 = vmul.f32 1.0, %v1415
    %v1417 = vrcp.pop %v583
    %v1418 = vmul.f32 %v583, %v1417
    %v1419 = vsub.f32 1.0, %v1418
    %v1420 = vmul.f32 %v1417, %v1419
    %v1421 = vadd.f32 %v1417, %v1420
    %vm1422 = vweird.f32 %v583
    %vm1423 = vweird.f32 %v1417
    %vm1424 = vmor %vm1422, %vm1423
    %v1425 = vsel %vm1424, %v1417, %v1421
    %v1426 = vand.u32 2147483647, %v583
    %vm1427 = vcmp.eq.f32.partialorder %v1426, 8.507059e+37
    %v1428 = vand.u32 %v583, 2147483648
    %v1429 = vor.u32 1.1754944e-38, %v1428
    %v1430 = vsel %vm1427, %v1429, %v1425
    %v1431 = vmul.f32 1.0, %v1430
    %v1432 = vrcp.pop %v584
    %v1433 = vmul.f32 %v584, %v1432
    %v1434 = vsub.f32 1.0, %v1433
    %v1435 = vmul.f32 %v1432, %v1434
    %v1436 = vadd.f32 %v1432, %v1435
    %vm1437 = vweird.f32 %v584
    %vm1438 = vweird.f32 %v1432
    %vm1439 = vmor %vm1437, %vm1438
    %v1440 = vsel %vm1439, %v1432, %v1436
    %v1441 = vand.u32 2147483647, %v584
    %vm1442 = vcmp.eq.f32.partialorder %v1441, 8.507059e+37
    %v1443 = vand.u32 %v584, 2147483648
    %v1444 = vor.u32 1.1754944e-38, %v1443
    %v1445 = vsel %vm1442, %v1444, %v1440
    %v1446 = vmul.f32 1.0, %v1445
    %v1447 = vrcp.pop %v585
    %v1448 = vmul.f32 %v585, %v1447
    %v1449 = vsub.f32 1.0, %v1448
    %v1450 = vmul.f32 %v1447, %v1449
    %v1451 = vadd.f32 %v1447, %v1450
    %vm1452 = vweird.f32 %v585
    %vm1453 = vweird.f32 %v1447
    %vm1454 = vmor %vm1452, %vm1453
    %v1455 = vsel %vm1454, %v1447, %v1451
    %v1456 = vand.u32 2147483647, %v585
    %vm1457 = vcmp.eq.f32.partialorder %v1456, 8.507059e+37
    %v1458 = vand.u32 %v585, 2147483648
    %v1459 = vor.u32 1.1754944e-38, %v1458
    %v1460 = vsel %vm1457, %v1459, %v1455
    %v1461 = vmul.f32 1.0, %v1460
    %v1462 = vrcp.pop %v586
    %v1463 = vmul.f32 %v586, %v1462
    %v1464 = vsub.f32 1.0, %v1463
    %v1465 = vmul.f32 %v1462, %v1464
    %v1466 = vadd.f32 %v1462, %v1465
    %vm1467 = vweird.f32 %v586
    %vm1468 = vweird.f32 %v1462
    %vm1469 = vmor %vm1467, %vm1468
    %v1470 = vsel %vm1469, %v1462, %v1466
    %v1471 = vand.u32 2147483647, %v586
    %vm1472 = vcmp.eq.f32.partialorder %v1471, 8.507059e+37
    %v1473 = vand.u32 %v586, 2147483648
    %v1474 = vor.u32 1.1754944e-38, %v1473
    %v1475 = vsel %vm1472, %v1474, %v1470
    %v1476 = vmul.f32 1.0, %v1475
    %v1477 = vrcp.pop %v587
    %v1478 = vmul.f32 %v587, %v1477
    %v1479 = vsub.f32 1.0, %v1478
    %v1480 = vmul.f32 %v1477, %v1479
    %v1481 = vadd.f32 %v1477, %v1480
    %vm1482 = vweird.f32 %v587
    %vm1483 = vweird.f32 %v1477
    %vm1484 = vmor %vm1482, %vm1483
    %v1485 = vsel %vm1484, %v1477, %v1481
    %v1486 = vand.u32 2147483647, %v587
    %vm1487 = vcmp.eq.f32.partialorder %v1486, 8.507059e+37
    %v1488 = vand.u32 %v587, 2147483648
    %v1489 = vor.u32 1.1754944e-38, %v1488
    %v1490 = vsel %vm1487, %v1489, %v1485
    %v1491 = vmul.f32 1.0, %v1490
    %v1492 = vrcp.pop %v588
    %v1493 = vmul.f32 %v588, %v1492
    %v1494 = vsub.f32 1.0, %v1493
    %v1495 = vmul.f32 %v1492, %v1494
    %v1496 = vadd.f32 %v1492, %v1495
    %vm1497 = vweird.f32 %v588
    %vm1498 = vweird.f32 %v1492
    %vm1499 = vmor %vm1497, %vm1498
    %v1500 = vsel %vm1499, %v1492, %v1496
    %v1501 = vand.u32 2147483647, %v588
    %vm1502 = vcmp.eq.f32.partialorder %v1501, 8.507059e+37
    %v1503 = vand.u32 %v588, 2147483648
    %v1504 = vor.u32 1.1754944e-38, %v1503
    %v1505 = vsel %vm1502, %v1504, %v1500
    %v1506 = vmul.f32 1.0, %v1505
    %v1507 = vrcp.pop %v589
    %v1508 = vmul.f32 %v589, %v1507
    %v1509 = vsub.f32 1.0, %v1508
    %v1510 = vmul.f32 %v1507, %v1509
    %v1511 = vadd.f32 %v1507, %v1510
    %vm1512 = vweird.f32 %v589
    %vm1513 = vweird.f32 %v1507
    %vm1514 = vmor %vm1512, %vm1513
    %v1515 = vsel %vm1514, %v1507, %v1511
    %v1516 = vand.u32 2147483647, %v589
    %vm1517 = vcmp.eq.f32.partialorder %v1516, 8.507059e+37
    %v1518 = vand.u32 %v589, 2147483648
    %v1519 = vor.u32 1.1754944e-38, %v1518
    %v1520 = vsel %vm1517, %v1519, %v1515
    %v1521 = vmul.f32 1.0, %v1520
    %v1522 = vrcp.pop %v590
    %v1523 = vmul.f32 %v590, %v1522
    %v1524 = vsub.f32 1.0, %v1523
    %v1525 = vmul.f32 %v1522, %v1524
    %v1526 = vadd.f32 %v1522, %v1525
    %vm1527 = vweird.f32 %v590
    %vm1528 = vweird.f32 %v1522
    %vm1529 = vmor %vm1527, %vm1528
    %v1530 = vsel %vm1529, %v1522, %v1526
    %v1531 = vand.u32 2147483647, %v590
    %vm1532 = vcmp.eq.f32.partialorder %v1531, 8.507059e+37
    %v1533 = vand.u32 %v590, 2147483648
    %v1534 = vor.u32 1.1754944e-38, %v1533
    %v1535 = vsel %vm1532, %v1534, %v1530
    %v1536 = vmul.f32 1.0, %v1535
    %v1537 = vrcp.pop %v591
    %v1538 = vmul.f32 %v591, %v1537
    %v1539 = vsub.f32 1.0, %v1538
    %v1540 = vmul.f32 %v1537, %v1539
    %v1541 = vadd.f32 %v1537, %v1540
    %vm1542 = vweird.f32 %v591
    %vm1543 = vweird.f32 %v1537
    %vm1544 = vmor %vm1542, %vm1543
    %v1545 = vsel %vm1544, %v1537, %v1541
    %v1546 = vand.u32 2147483647, %v591
    %vm1547 = vcmp.eq.f32.partialorder %v1546, 8.507059e+37
    %v1548 = vand.u32 %v591, 2147483648
    %v1549 = vor.u32 1.1754944e-38, %v1548
    %v1550 = vsel %vm1547, %v1549, %v1545
    %v1551 = vmul.f32 1.0, %v1550
    %1552 = vst [vmem:[#allocation7] sm:$0xff] %v606
    %1553 = vst [vmem:[#allocation7 + $0x8] sm:$0xff] %v621
    %1554 = vst [vmem:[#allocation7 + $0x10] sm:$0xff] %v636
    %1555 = vst [vmem:[#allocation7 + $0x18] sm:$0xff] %v651
    %1556 = vst [vmem:[#allocation7 + $0x20] sm:$0xff] %v666
    %1557 = vst [vmem:[#allocation7 + $0x28] sm:$0xff] %v681
    %1558 = vst [vmem:[#allocation7 + $0x30] sm:$0xff] %v696
    %1559 = vst [vmem:[#allocation7 + $0x38] sm:$0xff] %v711
    %1560 = vst [vmem:[#allocation7 + $0x40] sm:$0xff] %v726
    %1561 = vst [vmem:[#allocation7 + $0x48] sm:$0xff] %v741
    %1562 = vst [vmem:[#allocation7 + $0x50] sm:$0xff] %v756
    %1563 = vst [vmem:[#allocation7 + $0x58] sm:$0xff] %v771
    %1564 = vst [vmem:[#allocation7 + $0x60] sm:$0xff] %v786
    %1565 = vst [vmem:[#allocation7 + $0x68] sm:$0xff] %v801
    %1566 = vst [vmem:[#allocation7 + $0x70] sm:$0xff] %v816
    %1567 = vst [vmem:[#allocation7 + $0x78] sm:$0xff] %v831
    %1568 = vst [vmem:[#allocation7 + $0x80] sm:$0xff] %v846
    %1569 = vst [vmem:[#allocation7 + $0x88] sm:$0xff] %v861
    %1570 = vst [vmem:[#allocation7 + $0x90] sm:$0xff] %v876
    %1571 = vst [vmem:[#allocation7 + $0x98] sm:$0xff] %v891
    %1572 = vst [vmem:[#allocation7 + $0xa0] sm:$0xff] %v906
    %1573 = vst [vmem:[#allocation7 + $0xa8] sm:$0xff] %v921
    %1574 = vst [vmem:[#allocation7 + $0xb0] sm:$0xff] %v936
    %1575 = vst [vmem:[#allocation7 + $0xb8] sm:$0xff] %v951
    %1576 = vst [vmem:[#allocation7 + $0xc0] sm:$0xff] %v966
    %1577 = vst [vmem:[#allocation7 + $0xc8] sm:$0xff] %v981
    %1578 = vst [vmem:[#allocation7 + $0xd0] sm:$0xff] %v996
    %1579 = vst [vmem:[#allocation7 + $0xd8] sm:$0xff] %v1011
    %1580 = vst [vmem:[#allocation7 + $0xe0] sm:$0xff] %v1026
    %1581 = vst [vmem:[#allocation7 + $0xe8] sm:$0xff] %v1041
    %1582 = vst [vmem:[#allocation7 + $0xf0] sm:$0xff] %v1056
    %1583 = vst [vmem:[#allocation7 + $0xf8] sm:$0xff] %v1071
    %1584 = vst [vmem:[#allocation7 + $0x100] sm:$0xff] %v1086
    %1585 = vst [vmem:[#allocation7 + $0x108] sm:$0xff] %v1101
    %1586 = vst [vmem:[#allocation7 + $0x110] sm:$0xff] %v1116
    %1587 = vst [vmem:[#allocation7 + $0x118] sm:$0xff] %v1131
    %1588 = vst [vmem:[#allocation7 + $0x120] sm:$0xff] %v1146
    %1589 = vst [vmem:[#allocation7 + $0x128] sm:$0xff] %v1161
    %1590 = vst [vmem:[#allocation7 + $0x130] sm:$0xff] %v1176
    %1591 = vst [vmem:[#allocation7 + $0x138] sm:$0xff] %v1191
    %1592 = vst [vmem:[#allocation7 + $0x140] sm:$0xff] %v1206
    %1593 = vst [vmem:[#allocation7 + $0x148] sm:$0xff] %v1221
    %1594 = vst [vmem:[#allocation7 + $0x150] sm:$0xff] %v1236
    %1595 = vst [vmem:[#allocation7 + $0x158] sm:$0xff] %v1251
    %1596 = vst [vmem:[#allocation7 + $0x160] sm:$0xff] %v1266
    %1597 = vst [vmem:[#allocation7 + $0x168] sm:$0xff] %v1281
    %1598 = vst [vmem:[#allocation7 + $0x170] sm:$0xff] %v1296
    %1599 = vst [vmem:[#allocation7 + $0x178] sm:$0xff] %v1311
    %1600 = vst [vmem:[#allocation7 + $0x180] sm:$0xff] %v1326
    %1601 = vst [vmem:[#allocation7 + $0x188] sm:$0xff] %v1341
    %1602 = vst [vmem:[#allocation7 + $0x190] sm:$0xff] %v1356
    %1603 = vst [vmem:[#allocation7 + $0x198] sm:$0xff] %v1371
    %1604 = vst [vmem:[#allocation7 + $0x1a0] sm:$0xff] %v1386
    %1605 = vst [vmem:[#allocation7 + $0x1a8] sm:$0xff] %v1401
    %1606 = vst [vmem:[#allocation7 + $0x1b0] sm:$0xff] %v1416
    %1607 = vst [vmem:[#allocation7 + $0x1b8] sm:$0xff] %v1431
    %1608 = vst [vmem:[#allocation7 + $0x1c0] sm:$0xff] %v1446
    %1609 = vst [vmem:[#allocation7 + $0x1c8] sm:$0xff] %v1461
    %1610 = vst [vmem:[#allocation7 + $0x1d0] sm:$0xff] %v1476
    %1611 = vst [vmem:[#allocation7 + $0x1d8] sm:$0xff] %v1491
    %1612 = vst [vmem:[#allocation7 + $0x1e0] sm:$0xff] %v1506
    %1613 = vst [vmem:[#allocation7 + $0x1e8] sm:$0xff] %v1521
    %1614 = vst [vmem:[#allocation7 + $0x1f0] sm:$0xff] %v1536
    %1615 = vst [vmem:[#allocation7 + $0x1f8] sm:$0xff] %v1551
    // Predicated region
    $region18: #{tpu_custom_call.1} parent=1 // pred_check
      _
    $region19: #{tpu_custom_call.1} parent=1 // pred_check_branch
      %1617 = sbr.rel (0) target = $region21
    $region20: #{tpu_custom_call.1} parent=1 // pred_region
      %1619 = vsyncadd [#allocation4], 0
      %s1620 = sshll.u32 [#allocation7], 4
      %s1621 = int_to_ptr.vmem [resolvable:$true] %s1620
      %s1622 = sshll.u32 %s2, 4
      %s1623 = int_to_ptr.hbm [resolvable:$true] %s1622
      %1628 = dma.vmem_to_hbm [thread:$0]  %s1621, 8192, %s1623, [#allocation4], 256, 256, 16
    $region21: #{tpu_custom_call.1} parent=1 // pred_fallthru
      _
    // Predicated region
    $region22: #{tpu_custom_call.1} parent=1 // pred_check
      _
    $region23: #{tpu_custom_call.1} parent=1 // pred_check_branch
      %1630 = sbr.rel (0) target = $region25
    $region24: #{tpu_custom_call.1} parent=1 // pred_region
      %1632 = dma.done [#allocation4], 8192
    $region25: #{tpu_custom_call.1} parent=1 // pred_fallthru
      _
    %1633 = vsyncpa [#allocation3], 1
    %1634 = vsyncpa [#allocation6], 1
    %1635 = vsyncpa [#allocation4], 1

</llo_original>
